<compile_context>
chip_gen: v6e
topology: v6e:2x2x1
jax: 0.10.0
libtpu: 0.0.40
codegen_flags: <defaults>
</compile_context>

<pallas_src>
import functools

import jax
import jax.numpy as jnp
import numpy as np
from jax.experimental import pallas as pl
from jax.experimental.pallas import tpu as pltpu


def _pad8(n):
    return ((n + 7) // 8) * 8


# ---------------------------------------------------------------------------
# In-kernel helpers: time-neighbour access on a phase-major, batch-folded slab.
# Slab layout: shape (C, P*BG*L0), lane = p*(BG*L0) + b*L0 + m, time t = P*m + p.
# ---------------------------------------------------------------------------
def _shift_prev(x, lane, P, BL, L0):
    """value at time t-1 (same batch element); zeros before the signal start."""
    N = P * BL
    r2 = pltpu.roll(x, shift=(BL + 1) % N, axis=1)       # wraps to phase P-1, m-1
    inner = jnp.where(lane % L0 == 0, 0.0, r2)
    if P == 1:
        return inner
    r1 = pltpu.roll(x, shift=BL, axis=1)                 # phase p-1, same m
    return jnp.where(lane >= BL, r1, inner)


def _shift_next(x, lane, P, BL, L0):
    """value at time t+1 (same batch element); zeros past the signal end."""
    N = P * BL
    r2 = pltpu.roll(x, shift=(-(BL + 1)) % N, axis=1)    # wraps to phase 0, m+1
    inner = jnp.where(lane % L0 == L0 - 1, 0.0, r2)
    if P == 1:
        return inner
    r1 = pltpu.roll(x, shift=(-BL) % N, axis=1)          # phase p+1, same m
    return jnp.where(lane < (P - 1) * BL, r1, inner)


# ---------------------------------------------------------------------------
# Fused decoder kernel: one batch group per grid step.
# ---------------------------------------------------------------------------
def _decoder_kernel(*refs, n_layer, n_mels, L0, C0, mm_dtype):
    """refs = (z, fc_w, fc_b, [wcat_i, bc_i, wud_i, btt_i]*n_layer, wo, bo, out).

    z:   (BG, 1, latent)                fc_w: (latent, C0*L0)   [mm_dtype]
    out: (BG, n_mels, 2**n_layer * L0)  -- phase-major lanes (p, m).
    """
    z_ref, fcw_ref, fcb_ref = refs[0], refs[1], refs[2]
    wo_ref = refs[3 + 4 * n_layer]
    bo_ref = refs[4 + 4 * n_layer]
    out_ref = refs[5 + 4 * n_layer]

    BG = z_ref.shape[0]
    BL = BG * L0                                        # lanes per phase block

    # ---- fc + ReLU (fused; one matmul for the whole batch group) ----
    zrows = [z_ref[b] for b in range(BG)]               # each (1, latent)
    z_blk = zrows[0] if BG == 1 else jnp.concatenate(zrows, axis=0)
    h = jnp.dot(z_blk.astype(mm_dtype), fcw_ref[...],
                preferred_element_type=jnp.float32)
    h = jnp.maximum(h + fcb_ref[...], 0.0)              # (BG, C0*L0)

    # torch .view(-1, C0, L0), NCL layout: assemble the (C0_pad, BG*L0) slab.
    c0_pad = refs[3].shape[1] // 3
    rows = []
    for c in range(C0):
        pieces = [h[b:b + 1, c * L0:(c + 1) * L0] for b in range(BG)]
        rows.append(pieces[0] if BG == 1 else jnp.concatenate(pieces, axis=1))
    if c0_pad > C0:
        rows.append(jnp.zeros((c0_pad - C0, BL), jnp.float32))
    x = jnp.concatenate(rows, axis=0) if len(rows) > 1 else rows[0]

    # ---- up blocks (polyphase + lane-batched: one matmul per op per layer) ----
    # TODO(synk): for n_layer >~ 5 or very long audio_len, add an L0-tile grid
    # axis (n_layer-deep halo) instead of keeping the full slab live in vregs.
    P = 1
    for i in range(n_layer):
        wcat_ref = refs[3 + 4 * i]      # (Cout_p, 3*Cin_p)    [W0 | W1 | W2]
        bc_ref = refs[4 + 4 * i]        # (Cout_p, 1)
        wud_ref = refs[5 + 4 * i]       # (2*Cout_p, 2*Cout_p) [[V1,0],[V2,V0]]
        btt_ref = refs[6 + 4 * i]       # (2*Cout_p, 1)
        cin_p = wcat_ref.shape[1] // 3
        cout_p = wcat_ref.shape[0]
        N = P * BL
        lane_in = jax.lax.broadcasted_iota(jnp.int32, (cin_p, N), 1)
        lane_out = jax.lax.broadcasted_iota(jnp.int32, (cout_p, N), 1)

        # Conv1d(k=3, padding='same') + ReLU : single im2col matmul per layer.
        prv = _shift_prev(x, lane_in, P, BL, L0)
        nxt = _shift_next(x, lane_in, P, BL, L0)
        rhs = jnp.concatenate([prv, x, nxt], axis=0).astype(mm_dtype)
        conv = jnp.dot(wcat_ref[...], rhs, preferred_element_type=jnp.float32)
        conv = jnp.maximum(conv + bc_ref[...], 0.0)              # (Cout_p, N)

        # ConvTranspose1d(k=3, s=2, p=1, op=1): even (V1@y[t]) and odd
        # (V2@y[t] + V0@y[t+1]) taps fused into ONE matmul.
        nxt_c = _shift_next(conv, lane_out, P, BL, L0)
        trhs = jnp.concatenate([conv, nxt_c], axis=0).astype(mm_dtype)
        eo = jnp.dot(wud_ref[...], trhs, preferred_element_type=jnp.float32)
        eo = eo + btt_ref[...]                                   # (2*Cout_p, N)

        # Stride-2 upsample == phase-count doubling: lane-aligned block interleave.
        blocks = []
        for p in range(P):
            blocks.append(eo[:cout_p, p * BL:(p + 1) * BL])      # new phase 2p
            blocks.append(eo[cout_p:, p * BL:(p + 1) * BL])      # new phase 2p+1
        x = jnp.concatenate(blocks, axis=1)                      # (Cout_p, 2*N)
        P *= 2

    # ---- out_conv (1x1) + sigmoid; lane-dense stores ----
    y = jnp.dot(wo_ref[...], x.astype(mm_dtype), preferred_element_type=jnp.float32)
    y = y + bo_ref[...]                                          # (n_mels, P*BL)
    y = pl.reciprocal(1.0 + jnp.exp(-y), approx=True)            # sigmoid (EUP)

    for b in range(BG):
        for p in range(P):
            out_ref[b, :, p * L0:(p + 1) * L0] = (
                y[:, p * BL + b * L0: p * BL + (b + 1) * L0])


# ---------------------------------------------------------------------------
# One-time weight preparation (hoisted out of the per-forward path).
# ---------------------------------------------------------------------------
def prepare_params(params, *, n_layer, audio_len, n_mels, mm_dtype=jnp.bfloat16):
    """Torch layouts -> padded / im2col / bf16 kernel layouts.  Run once."""
    assert audio_len % (2 ** n_layer) == 0
    L0 = audio_len // (2 ** n_layer)
    C0 = params["up"][0]["wc"].shape[1]

    fc_w = jnp.asarray(params["fc"]["w"], jnp.float32).T.astype(mm_dtype)
    fc_b = jnp.asarray(params["fc"]["b"], jnp.float32).reshape(1, -1)

    layers = []
    for i in range(n_layer):
        p = params["up"][i]
        wc = jnp.asarray(p["wc"], jnp.float32)                  # (Cout, Cin, 3)
        cout, cin, _ = wc.shape
        cin_p, cout_p = _pad8(cin), _pad8(cout)
        wc_p = jnp.zeros((cout_p, cin_p, 3), jnp.float32).at[:cout, :cin].set(wc)
        wcat = jnp.transpose(wc_p, (0, 2, 1)).reshape(cout_p, 3 * cin_p)
        bc = jnp.zeros((cout_p, 1), jnp.float32).at[:cout, 0].set(
            jnp.asarray(p["bc"], jnp.float32))
        wt = jnp.asarray(p["wt"], jnp.float32)                  # (Cin_t, Cout_t, 3)
        wt_p = jnp.zeros((cout_p, cout_p, 3), jnp.float32).at[:cout, :cout].set(wt)
        V = jnp.transpose(wt_p, (2, 1, 0))                      # V[k] = Wt[:,:,k].T
        wud = jnp.zeros((2 * cout_p, 2 * cout_p), jnp.float32)
        wud = wud.at[:cout_p, :cout_p].set(V[1])                # even <- y[t]
        wud = wud.at[cout_p:, :cout_p].set(V[2])                # odd  <- y[t]
        wud = wud.at[cout_p:, cout_p:].set(V[0])                # odd  <- y[t+1]
        bt = jnp.asarray(p["bt"], jnp.float32)
        btt = jnp.zeros((2 * cout_p, 1), jnp.float32)
        btt = btt.at[:cout, 0].set(bt).at[cout_p:cout_p + cout, 0].set(bt)
        layers.append(dict(wcat=wcat.astype(mm_dtype), bc=bc,
                           wud=wud.astype(mm_dtype), btt=btt))

    c_last = params["up"][-1]["wc"].shape[0]
    c_last_p = _pad8(c_last)
    wo = jnp.asarray(params["out"]["w"], jnp.float32)[:, :, 0]   # (n_mels, c_last)
    wo_p = jnp.zeros((n_mels, c_last_p), jnp.float32).at[:, :c_last].set(wo)
    bo = jnp.asarray(params["out"]["b"], jnp.float32).reshape(n_mels, 1)

    consts = dict(fc_w=fc_w, fc_b=fc_b, layers=layers,
                  wo=wo_p.astype(mm_dtype), bo=bo)
    meta = dict(n_layer=n_layer, L0=L0, C0=C0, n_mels=n_mels, audio_len=audio_len)
    return consts, meta


# ---------------------------------------------------------------------------
# Forward wrapper: exactly one pallas_call + a tiny output de-interleave.
# ---------------------------------------------------------------------------
def audio_decoder_forward(z, consts, *, meta, batch_groups=None):
    """z: (B, latent) -> (B, n_mels, audio_len), matches AudioDecoder1D.forward."""
    n_layer, L0, C0 = meta["n_layer"], meta["L0"], meta["C0"]
    n_mels, audio_len = meta["n_mels"], meta["audio_len"]
    B, latent = z.shape
    P = 2 ** n_layer

    if batch_groups is None:
        # Default: 2 parallel grid steps keep both v7x TensorCores busy; on
        # single-TC v5e/v6e pass batch_groups=1 to fold the whole batch onto
        # the lane axis (one grid step, widest matmul N).
        batch_groups = 2 if (B >= 2 and B % 2 == 0) else 1
    G = batch_groups
    assert B % G == 0, (B, G)
    BG = B // G

    z3 = z.astype(jnp.float32).reshape(B, 1, latent)

    inputs = [z3, consts["fc_w"], consts["fc_b"]]
    in_specs = [
        pl.BlockSpec((BG, 1, latent), lambda g: (g, 0, 0)),
        pl.BlockSpec(consts["fc_w"].shape, lambda g: (0, 0)),
        pl.BlockSpec(consts["fc_b"].shape, lambda g: (0, 0)),
    ]
    for lyr in consts["layers"]:
        for name in ("wcat", "bc", "wud", "btt"):
            a = lyr[name]
            inputs.append(a)
            in_specs.append(pl.BlockSpec(a.shape, lambda g: (0, 0)))
    for name in ("wo", "bo"):
        a = consts[name]
        inputs.append(a)
        in_specs.append(pl.BlockSpec(a.shape, lambda g: (0, 0)))

    kernel = functools.partial(
        _decoder_kernel, n_layer=n_layer, n_mels=n_mels, L0=L0, C0=C0,
        mm_dtype=consts["fc_w"].dtype)

    out_pm = pl.pallas_call(
        kernel,
        out_shape=jax.ShapeDtypeStruct((B, n_mels, P * L0), jnp.float32),
        grid_spec=pltpu.PrefetchScalarGridSpec(
            num_scalar_prefetch=0,
            grid=(G,),
            in_specs=in_specs,
            out_specs=pl.BlockSpec((BG, n_mels, P * L0), lambda g: (g, 0, 0)),
        ),
        compiler_params=pltpu.CompilerParams(
            dimension_semantics=("parallel",),
        ),
    )(*inputs)

    # Phase-major -> natural time order (t = P*m + p): one tiny XLA transpose.
    # TODO(synk): in-kernel de-interleave would need lane-stride-P stores.
    return (out_pm.reshape(B, n_mels, P, L0)
            .transpose(0, 1, 3, 2)
            .reshape(B, n_mels, audio_len))


# ---------------------------------------------------------------------------
# Deterministic parameter init (synthetic; no checkpoint loading)
# ---------------------------------------------------------------------------
def init_params(key, audio_len, n_mels, n_layer, channels, latent_dim):
    ch = list(channels)[::-1]                 # AudioDecoder1D reverses `channels`
    C0 = ch[0]
    L0 = audio_len // (2 ** n_layer)
    keys = jax.random.split(key, 2 + n_layer)
    kf1, kf2 = jax.random.split(keys[0])
    params = {
        "fc": dict(
            w=0.2 * jax.random.normal(kf1, (C0 * L0, latent_dim), jnp.float32),
            b=0.1 * jax.random.normal(kf2, (C0 * L0,), jnp.float32),
        ),
        "up": [],
    }
    in_ch = C0
    for i in range(n_layer):
        k1, k2, k3, k4 = jax.random.split(keys[1 + i], 4)
        out_ch = ch[i]
        params["up"].append(dict(
            wc=0.3 * jax.random.normal(k1, (out_ch, in_ch, 3), jnp.float32),
            bc=0.1 * jax.random.normal(k2, (out_ch,), jnp.float32),
            wt=0.3 * jax.random.normal(k3, (out_ch, out_ch, 3), jnp.float32),
            bt=0.1 * jax.random.normal(k4, (out_ch,), jnp.float32),
        ))
        in_ch = out_ch
    k1, k2 = jax.random.split(keys[-1])
    params["out"] = dict(
        w=0.3 * jax.random.normal(k1, (n_mels, ch[-1], 1), jnp.float32),
        b=0.1 * jax.random.normal(k2, (n_mels,), jnp.float32),
    )
    return params


# ---------------------------------------------------------------------------
# Pure-JAX reference (mirrors the PyTorch forward) for correctness check
# ---------------------------------------------------------------------------
def ref_forward(z, params, *, n_layer, audio_len):
    B = z.shape[0]
    x = jax.nn.relu(z @ params["fc"]["w"].T + params["fc"]["b"])
    C0 = params["up"][0]["wc"].shape[1]
    L0 = audio_len // (2 ** n_layer)
    x = x.reshape(B, C0, L0)
    for i in range(n_layer):
        p = params["up"][i]
        x = jax.lax.conv_general_dilated(
            x, p["wc"], window_strides=(1,), padding=[(1, 1)],
            dimension_numbers=("NCH", "OIH", "NCH"),
            precision=jax.lax.Precision.HIGHEST) + p["bc"][None, :, None]
        x = jax.nn.relu(x)
        # ConvTranspose1d(k=3, s=2, p=1, op=1) == lhs-dilated conv, flipped taps.
        wf = jnp.transpose(jnp.flip(p["wt"], axis=2), (1, 0, 2))
        x = jax.lax.conv_general_dilated(
            x, wf, window_strides=(1,), padding=[(1, 2)], lhs_dilation=(2,),
            dimension_numbers=("NCH", "OIH", "NCH"),
            precision=jax.lax.Precision.HIGHEST) + p["bt"][None, :, None]
    y = jax.lax.conv_general_dilated(
        x, params["out"]["w"], window_strides=(1,), padding=[(0, 0)],
        dimension_numbers=("NCH", "OIH", "NCH"),
        precision=jax.lax.Precision.HIGHEST) + params["out"]["b"][None, :, None]
    return jax.nn.sigmoid(y)


# ---------------------------------------------------------------------------
if __name__ == "__main__":
    B = 2
    n_mels = 4
    n_layer = 2
    audio_len = 512        # -> L0 = 128: each (batch, phase) slab block is one vreg wide
    channels = [4, 8]      # encoder-order list; the decoder reverses it -> [8, 4]
    latent_dim = 32

    key = jax.random.PRNGKey(0)
    kz, kp = jax.random.split(key)
    z = jax.random.normal(kz, (B, latent_dim), jnp.float32)
    params = init_params(kp, audio_len, n_mels, n_layer, channels, latent_dim)

    consts, meta = prepare_params(params, n_layer=n_layer, audio_len=audio_len,
                                  n_mels=n_mels)
    ref = jax.block_until_ready(
        ref_forward(z, params, n_layer=n_layer, audio_len=audio_len))

    # v7x-style: 2 parallel grid steps (one batch element each, one per TC).
    out_a = jax.block_until_ready(
        audio_decoder_forward(z, consts, meta=meta, batch_groups=2))
    assert out_a.shape == (B, n_mels, audio_len), out_a.shape
    np.testing.assert_allclose(np.asarray(out_a), np.asarray(ref),
                               rtol=2e-2, atol=2e-2)

    # v5e/v6e-style: a single grid step, whole batch folded onto the lane axis.
    out_b = jax.block_until_ready(
        audio_decoder_forward(z, consts, meta=meta, batch_groups=1))
    np.testing.assert_allclose(np.asarray(out_b), np.asarray(ref),
                               rtol=2e-2, atol=2e-2)

    print("KERNEL_OK")
</pallas_src>

<mosaic_0001>
module attributes {stable_mosaic.version = 11 : i64} {
  func.func @_decoder_kernel(%arg0: i32, %arg1: memref<1x1x32xf32, #tpu.memory_space<vmem>>, %arg2: memref<32x1024xbf16, #tpu.memory_space<vmem>>, %arg3: memref<1x1024xf32, #tpu.memory_space<vmem>>, %arg4: memref<8x24xbf16, #tpu.memory_space<vmem>>, %arg5: memref<8x1xf32, #tpu.memory_space<vmem>>, %arg6: memref<16x16xbf16, #tpu.memory_space<vmem>>, %arg7: memref<16x1xf32, #tpu.memory_space<vmem>>, %arg8: memref<8x24xbf16, #tpu.memory_space<vmem>>, %arg9: memref<8x1xf32, #tpu.memory_space<vmem>>, %arg10: memref<16x16xbf16, #tpu.memory_space<vmem>>, %arg11: memref<16x1xf32, #tpu.memory_space<vmem>>, %arg12: memref<4x8xbf16, #tpu.memory_space<vmem>>, %arg13: memref<4x1xf32, #tpu.memory_space<vmem>>, %arg14: memref<1x4x512xf32, #tpu.memory_space<vmem>>) attributes {dimension_semantics = [#tpu.dimension_semantics<parallel>], iteration_bounds = array<i64: 2>, scalar_prefetch = 0 : i64, scratch_operands = 0 : i64, tpu.core_type = #tpu.core_type<tc>, window_params = [{transform_indices = @transform_0, window_bounds = array<i64: 1, 1, 32>}, {pipeline_mode = #tpu.pipeline_mode<synchronous>, transform_indices = @transform_1, window_bounds = array<i64: 32, 1024>}, {pipeline_mode = #tpu.pipeline_mode<synchronous>, transform_indices = @transform_2, window_bounds = array<i64: 1, 1024>}, {pipeline_mode = #tpu.pipeline_mode<synchronous>, transform_indices = @transform_3, window_bounds = array<i64: 8, 24>}, {pipeline_mode = #tpu.pipeline_mode<synchronous>, transform_indices = @transform_4, window_bounds = array<i64: 8, 1>}, {pipeline_mode = #tpu.pipeline_mode<synchronous>, transform_indices = @transform_5, window_bounds = array<i64: 16, 16>}, {pipeline_mode = #tpu.pipeline_mode<synchronous>, transform_indices = @transform_6, window_bounds = array<i64: 16, 1>}, {pipeline_mode = #tpu.pipeline_mode<synchronous>, transform_indices = @transform_7, window_bounds = array<i64: 8, 24>}, {pipeline_mode = #tpu.pipeline_mode<synchronous>, transform_indices = @transform_8, window_bounds = array<i64: 8, 1>}, {pipeline_mode = #tpu.pipeline_mode<synchronous>, transform_indices = @transform_9, window_bounds = array<i64: 16, 16>}, {pipeline_mode = #tpu.pipeline_mode<synchronous>, transform_indices = @transform_10, window_bounds = array<i64: 16, 1>}, {pipeline_mode = #tpu.pipeline_mode<synchronous>, transform_indices = @transform_11, window_bounds = array<i64: 4, 8>}, {pipeline_mode = #tpu.pipeline_mode<synchronous>, transform_indices = @transform_12, window_bounds = array<i64: 4, 1>}, {transform_indices = @transform_13, window_bounds = array<i64: 1, 4, 512>}]} {
    %c0 = arith.constant 0 : index
    %c0_0 = arith.constant 0 : index
    %c0_1 = arith.constant 0 : index
    %0 = vector.load %arg1[%c0, %c0_0, %c0_1] : memref<1x1x32xf32, #tpu.memory_space<vmem>>, vector<1x1x32xf32>
    %1 = vector.shape_cast %0 : vector<1x1x32xf32> to vector<1x32xf32>
    %2 = arith.truncf %1 : vector<1x32xf32> to vector<1x32xbf16>
    %c0_2 = arith.constant 0 : index
    %c0_3 = arith.constant 0 : index
    %3 = vector.load %arg2[%c0_2, %c0_3] : memref<32x1024xbf16, #tpu.memory_space<vmem>>, vector<32x1024xbf16>
    %cst = arith.constant dense<0.000000e+00> : vector<1x1024xf32>
    %4 = tpu.matmul %2, %3, %cst {dimension_numbers = #tpu.dot_dimension_numbers<[1], [0], [0], [1], [0, 0, 1, 1], [], []>} : vector<1x32xbf16>, vector<32x1024xbf16>, vector<1x1024xf32> -> vector<1x1024xf32>
    %c0_4 = arith.constant 0 : index
    %c0_5 = arith.constant 0 : index
    %5 = vector.load %arg3[%c0_4, %c0_5] : memref<1x1024xf32, #tpu.memory_space<vmem>>, vector<1x1024xf32>
    %6 = arith.addf %4, %5 : vector<1x1024xf32>
    %cst_6 = arith.constant 0.000000e+00 : f32
    %7 = vector.broadcast %cst_6 : f32 to vector<1x1024xf32>
    %8 = arith.maximumf %6, %7 : vector<1x1024xf32>
    %9 = vector.extract_strided_slice %8 {offsets = [0, 0], sizes = [1, 128], strides = [1, 1]} : vector<1x1024xf32> to vector<1x128xf32>
    %10 = vector.extract_strided_slice %8 {offsets = [0, 128], sizes = [1, 128], strides = [1, 1]} : vector<1x1024xf32> to vector<1x128xf32>
    %11 = vector.extract_strided_slice %8 {offsets = [0, 256], sizes = [1, 128], strides = [1, 1]} : vector<1x1024xf32> to vector<1x128xf32>
    %12 = vector.extract_strided_slice %8 {offsets = [0, 384], sizes = [1, 128], strides = [1, 1]} : vector<1x1024xf32> to vector<1x128xf32>
    %13 = vector.extract_strided_slice %8 {offsets = [0, 512], sizes = [1, 128], strides = [1, 1]} : vector<1x1024xf32> to vector<1x128xf32>
    %14 = vector.extract_strided_slice %8 {offsets = [0, 640], sizes = [1, 128], strides = [1, 1]} : vector<1x1024xf32> to vector<1x128xf32>
    %15 = vector.extract_strided_slice %8 {offsets = [0, 768], sizes = [1, 128], strides = [1, 1]} : vector<1x1024xf32> to vector<1x128xf32>
    %16 = vector.extract_strided_slice %8 {offsets = [0, 896], sizes = [1, 128], strides = [1, 1]} : vector<1x1024xf32> to vector<1x128xf32>
    %17 = tpu.concatenate %9, %10, %11, %12, %13, %14, %15, %16 in 0 : vector<1x128xf32>, vector<1x128xf32>, vector<1x128xf32>, vector<1x128xf32>, vector<1x128xf32>, vector<1x128xf32>, vector<1x128xf32>, vector<1x128xf32> -> vector<8x128xf32>
    %18 = tpu.iota {dimensions = array<i32: 1>} : vector<8x128xi32>
    %19 = tpu.iota {dimensions = array<i32: 1>} : vector<8x128xi32>
    %c1_i32 = arith.constant 1 : i32
    %20 = tpu.dynamic_rotate %17 by %c1_i32 dim 1 : vector<8x128xf32>, i32 -> vector<8x128xf32>
    %c128_i32 = arith.constant 128 : i32
    %c0_i32 = arith.constant 0 : i32
    %21 = arith.cmpi eq, %c128_i32, %c0_i32 : i32
    %c1_i32_7 = arith.constant 1 : i32
    %22 = arith.select %21, %c1_i32_7, %c128_i32 : i32
    %23 = vector.broadcast %22 : i32 to vector<8x128xi32>
    %24 = arith.remsi %18, %23 : vector<8x128xi32>
    %c0_i32_8 = arith.constant 0 : i32
    %25 = vector.broadcast %c0_i32_8 : i32 to vector<8x128xi32>
    %26 = arith.cmpi ne, %24, %25 : vector<8x128xi32>
    %c0_i32_9 = arith.constant 0 : i32
    %27 = vector.broadcast %c0_i32_9 : i32 to vector<8x128xi32>
    %28 = arith.cmpi slt, %24, %27 : vector<8x128xi32>
    %c0_i32_10 = arith.constant 0 : i32
    %29 = arith.cmpi slt, %22, %c0_i32_10 : i32
    %30 = vector.broadcast %29 : i1 to vector<8x128xi1>
    %31 = vector.broadcast %30 : vector<8x128xi1> to vector<8x128xi1>
    %32 = arith.xori %28, %31 : vector<8x128xi1>
    %33 = arith.andi %32, %26 : vector<8x128xi1>
    %34 = vector.broadcast %22 : i32 to vector<8x128xi32>
    %35 = arith.addi %24, %34 : vector<8x128xi32>
    %36 = arith.select %33, %35, %24 : vector<8x128xi1>, vector<8x128xi32>
    %c0_i32_11 = arith.constant 0 : i32
    %37 = vector.broadcast %c0_i32_11 : i32 to vector<8x128xi32>
    %38 = arith.cmpi eq, %36, %37 : vector<8x128xi32>
    %cst_12 = arith.constant 0.000000e+00 : f32
    %39 = vector.broadcast %cst_12 : f32 to vector<8x128xf32>
    %40 = arith.select %38, %39, %20 : vector<8x128xi1>, vector<8x128xf32>
    %c127_i32 = arith.constant 127 : i32
    %41 = tpu.dynamic_rotate %17 by %c127_i32 dim 1 : vector<8x128xf32>, i32 -> vector<8x128xf32>
    %c128_i32_13 = arith.constant 128 : i32
    %c0_i32_14 = arith.constant 0 : i32
    %42 = arith.cmpi eq, %c128_i32_13, %c0_i32_14 : i32
    %c1_i32_15 = arith.constant 1 : i32
    %43 = arith.select %42, %c1_i32_15, %c128_i32_13 : i32
    %44 = vector.broadcast %43 : i32 to vector<8x128xi32>
    %45 = arith.remsi %18, %44 : vector<8x128xi32>
    %c0_i32_16 = arith.constant 0 : i32
    %46 = vector.broadcast %c0_i32_16 : i32 to vector<8x128xi32>
    %47 = arith.cmpi ne, %45, %46 : vector<8x128xi32>
    %c0_i32_17 = arith.constant 0 : i32
    %48 = vector.broadcast %c0_i32_17 : i32 to vector<8x128xi32>
    %49 = arith.cmpi slt, %45, %48 : vector<8x128xi32>
    %c0_i32_18 = arith.constant 0 : i32
    %50 = arith.cmpi slt, %43, %c0_i32_18 : i32
    %51 = vector.broadcast %50 : i1 to vector<8x128xi1>
    %52 = vector.broadcast %51 : vector<8x128xi1> to vector<8x128xi1>
    %53 = arith.xori %49, %52 : vector<8x128xi1>
    %54 = arith.andi %53, %47 : vector<8x128xi1>
    %55 = vector.broadcast %43 : i32 to vector<8x128xi32>
    %56 = arith.addi %45, %55 : vector<8x128xi32>
    %57 = arith.select %54, %56, %45 : vector<8x128xi1>, vector<8x128xi32>
    %c127_i32_19 = arith.constant 127 : i32
    %58 = vector.broadcast %c127_i32_19 : i32 to vector<8x128xi32>
    %59 = arith.cmpi eq, %57, %58 : vector<8x128xi32>
    %cst_20 = arith.constant 0.000000e+00 : f32
    %60 = vector.broadcast %cst_20 : f32 to vector<8x128xf32>
    %61 = arith.select %59, %60, %41 : vector<8x128xi1>, vector<8x128xf32>
    %62 = tpu.concatenate %40, %17, %61 in 0 : vector<8x128xf32>, vector<8x128xf32>, vector<8x128xf32> -> vector<24x128xf32>
    %63 = arith.truncf %62 : vector<24x128xf32> to vector<24x128xbf16>
    %c0_21 = arith.constant 0 : index
    %c0_22 = arith.constant 0 : index
    %64 = vector.load %arg4[%c0_21, %c0_22] : memref<8x24xbf16, #tpu.memory_space<vmem>>, vector<8x24xbf16>
    %cst_23 = arith.constant dense<0.000000e+00> : vector<8x128xf32>
    %65 = tpu.matmul %64, %63, %cst_23 {dimension_numbers = #tpu.dot_dimension_numbers<[1], [0], [0], [1], [0, 0, 1, 1], [], []>} : vector<8x24xbf16>, vector<24x128xbf16>, vector<8x128xf32> -> vector<8x128xf32>
    %c0_24 = arith.constant 0 : index
    %c0_25 = arith.constant 0 : index
    %66 = vector.load %arg5[%c0_24, %c0_25] : memref<8x1xf32, #tpu.memory_space<vmem>>, vector<8x1xf32>
    %67 = vector.broadcast %66 : vector<8x1xf32> to vector<8x128xf32>
    %68 = arith.addf %65, %67 : vector<8x128xf32>
    %cst_26 = arith.constant 0.000000e+00 : f32
    %69 = vector.broadcast %cst_26 : f32 to vector<8x128xf32>
    %70 = arith.maximumf %68, %69 : vector<8x128xf32>
    %c127_i32_27 = arith.constant 127 : i32
    %71 = tpu.dynamic_rotate %70 by %c127_i32_27 dim 1 : vector<8x128xf32>, i32 -> vector<8x128xf32>
    %c128_i32_28 = arith.constant 128 : i32
    %c0_i32_29 = arith.constant 0 : i32
    %72 = arith.cmpi eq, %c128_i32_28, %c0_i32_29 : i32
    %c1_i32_30 = arith.constant 1 : i32
    %73 = arith.select %72, %c1_i32_30, %c128_i32_28 : i32
    %74 = vector.broadcast %73 : i32 to vector<8x128xi32>
    %75 = arith.remsi %19, %74 : vector<8x128xi32>
    %c0_i32_31 = arith.constant 0 : i32
    %76 = vector.broadcast %c0_i32_31 : i32 to vector<8x128xi32>
    %77 = arith.cmpi ne, %75, %76 : vector<8x128xi32>
    %c0_i32_32 = arith.constant 0 : i32
    %78 = vector.broadcast %c0_i32_32 : i32 to vector<8x128xi32>
    %79 = arith.cmpi slt, %75, %78 : vector<8x128xi32>
    %c0_i32_33 = arith.constant 0 : i32
    %80 = arith.cmpi slt, %73, %c0_i32_33 : i32
    %81 = vector.broadcast %80 : i1 to vector<8x128xi1>
    %82 = vector.broadcast %81 : vector<8x128xi1> to vector<8x128xi1>
    %83 = arith.xori %79, %82 : vector<8x128xi1>
    %84 = arith.andi %83, %77 : vector<8x128xi1>
    %85 = vector.broadcast %73 : i32 to vector<8x128xi32>
    %86 = arith.addi %75, %85 : vector<8x128xi32>
    %87 = arith.select %84, %86, %75 : vector<8x128xi1>, vector<8x128xi32>
    %c127_i32_34 = arith.constant 127 : i32
    %88 = vector.broadcast %c127_i32_34 : i32 to vector<8x128xi32>
    %89 = arith.cmpi eq, %87, %88 : vector<8x128xi32>
    %cst_35 = arith.constant 0.000000e+00 : f32
    %90 = vector.broadcast %cst_35 : f32 to vector<8x128xf32>
    %91 = arith.select %89, %90, %71 : vector<8x128xi1>, vector<8x128xf32>
    %92 = tpu.concatenate %70, %91 in 0 : vector<8x128xf32>, vector<8x128xf32> -> vector<16x128xf32>
    %93 = arith.truncf %92 : vector<16x128xf32> to vector<16x128xbf16>
    %c0_36 = arith.constant 0 : index
    %c0_37 = arith.constant 0 : index
    %94 = vector.load %arg6[%c0_36, %c0_37] : memref<16x16xbf16, #tpu.memory_space<vmem>>, vector<16x16xbf16>
    %cst_38 = arith.constant dense<0.000000e+00> : vector<16x128xf32>
    %95 = tpu.matmul %94, %93, %cst_38 {dimension_numbers = #tpu.dot_dimension_numbers<[1], [0], [0], [1], [0, 0, 1, 1], [], []>} : vector<16x16xbf16>, vector<16x128xbf16>, vector<16x128xf32> -> vector<16x128xf32>
    %c0_39 = arith.constant 0 : index
    %c0_40 = arith.constant 0 : index
    %96 = vector.load %arg7[%c0_39, %c0_40] : memref<16x1xf32, #tpu.memory_space<vmem>>, vector<16x1xf32>
    %97 = vector.broadcast %96 : vector<16x1xf32> to vector<16x128xf32>
    %98 = arith.addf %95, %97 : vector<16x128xf32>
    %99 = vector.extract_strided_slice %98 {offsets = [0, 0], sizes = [8, 128], strides = [1, 1]} : vector<16x128xf32> to vector<8x128xf32>
    %100 = vector.extract_strided_slice %98 {offsets = [8, 0], sizes = [8, 128], strides = [1, 1]} : vector<16x128xf32> to vector<8x128xf32>
    %101 = tpu.concatenate %99, %100 in 1 : vector<8x128xf32>, vector<8x128xf32> -> vector<8x256xf32>
    %102 = tpu.iota {dimensions = array<i32: 1>} : vector<8x256xi32>
    %103 = tpu.iota {dimensions = array<i32: 1>} : vector<8x256xi32>
    %c129_i32 = arith.constant 129 : i32
    %104 = tpu.dynamic_rotate %101 by %c129_i32 dim 1 : vector<8x256xf32>, i32 -> vector<8x256xf32>
    %c128_i32_41 = arith.constant 128 : i32
    %c0_i32_42 = arith.constant 0 : i32
    %105 = arith.cmpi eq, %c128_i32_41, %c0_i32_42 : i32
    %c1_i32_43 = arith.constant 1 : i32
    %106 = arith.select %105, %c1_i32_43, %c128_i32_41 : i32
    %107 = vector.broadcast %106 : i32 to vector<8x256xi32>
    %108 = arith.remsi %102, %107 : vector<8x256xi32>
    %c0_i32_44 = arith.constant 0 : i32
    %109 = vector.broadcast %c0_i32_44 : i32 to vector<8x256xi32>
    %110 = arith.cmpi ne, %108, %109 : vector<8x256xi32>
    %c0_i32_45 = arith.constant 0 : i32
    %111 = vector.broadcast %c0_i32_45 : i32 to vector<8x256xi32>
    %112 = arith.cmpi slt, %108, %111 : vector<8x256xi32>
    %c0_i32_46 = arith.constant 0 : i32
    %113 = arith.cmpi slt, %106, %c0_i32_46 : i32
    %114 = vector.broadcast %113 : i1 to vector<8x256xi1>
    %115 = vector.broadcast %114 : vector<8x256xi1> to vector<8x256xi1>
    %116 = arith.xori %112, %115 : vector<8x256xi1>
    %117 = arith.andi %116, %110 : vector<8x256xi1>
    %118 = vector.broadcast %106 : i32 to vector<8x256xi32>
    %119 = arith.addi %108, %118 : vector<8x256xi32>
    %120 = arith.select %117, %119, %108 : vector<8x256xi1>, vector<8x256xi32>
    %c0_i32_47 = arith.constant 0 : i32
    %121 = vector.broadcast %c0_i32_47 : i32 to vector<8x256xi32>
    %122 = arith.cmpi eq, %120, %121 : vector<8x256xi32>
    %cst_48 = arith.constant 0.000000e+00 : f32
    %123 = vector.broadcast %cst_48 : f32 to vector<8x256xf32>
    %124 = arith.select %122, %123, %104 : vector<8x256xi1>, vector<8x256xf32>
    %c128_i32_49 = arith.constant 128 : i32
    %125 = tpu.dynamic_rotate %101 by %c128_i32_49 dim 1 : vector<8x256xf32>, i32 -> vector<8x256xf32>
    %c128_i32_50 = arith.constant 128 : i32
    %126 = vector.broadcast %c128_i32_50 : i32 to vector<8x256xi32>
    %127 = arith.cmpi sge, %102, %126 : vector<8x256xi32>
    %128 = arith.select %127, %125, %124 : vector<8x256xi1>, vector<8x256xf32>
    %c127_i32_51 = arith.constant 127 : i32
    %129 = tpu.dynamic_rotate %101 by %c127_i32_51 dim 1 : vector<8x256xf32>, i32 -> vector<8x256xf32>
    %c128_i32_52 = arith.constant 128 : i32
    %c0_i32_53 = arith.constant 0 : i32
    %130 = arith.cmpi eq, %c128_i32_52, %c0_i32_53 : i32
    %c1_i32_54 = arith.constant 1 : i32
    %131 = arith.select %130, %c1_i32_54, %c128_i32_52 : i32
    %132 = vector.broadcast %131 : i32 to vector<8x256xi32>
    %133 = arith.remsi %102, %132 : vector<8x256xi32>
    %c0_i32_55 = arith.constant 0 : i32
    %134 = vector.broadcast %c0_i32_55 : i32 to vector<8x256xi32>
    %135 = arith.cmpi ne, %133, %134 : vector<8x256xi32>
    %c0_i32_56 = arith.constant 0 : i32
    %136 = vector.broadcast %c0_i32_56 : i32 to vector<8x256xi32>
    %137 = arith.cmpi slt, %133, %136 : vector<8x256xi32>
    %c0_i32_57 = arith.constant 0 : i32
    %138 = arith.cmpi slt, %131, %c0_i32_57 : i32
    %139 = vector.broadcast %138 : i1 to vector<8x256xi1>
    %140 = vector.broadcast %139 : vector<8x256xi1> to vector<8x256xi1>
    %141 = arith.xori %137, %140 : vector<8x256xi1>
    %142 = arith.andi %141, %135 : vector<8x256xi1>
    %143 = vector.broadcast %131 : i32 to vector<8x256xi32>
    %144 = arith.addi %133, %143 : vector<8x256xi32>
    %145 = arith.select %142, %144, %133 : vector<8x256xi1>, vector<8x256xi32>
    %c127_i32_58 = arith.constant 127 : i32
    %146 = vector.broadcast %c127_i32_58 : i32 to vector<8x256xi32>
    %147 = arith.cmpi eq, %145, %146 : vector<8x256xi32>
    %cst_59 = arith.constant 0.000000e+00 : f32
    %148 = vector.broadcast %cst_59 : f32 to vector<8x256xf32>
    %149 = arith.select %147, %148, %129 : vector<8x256xi1>, vector<8x256xf32>
    %c128_i32_60 = arith.constant 128 : i32
    %150 = tpu.dynamic_rotate %101 by %c128_i32_60 dim 1 : vector<8x256xf32>, i32 -> vector<8x256xf32>
    %c128_i32_61 = arith.constant 128 : i32
    %151 = vector.broadcast %c128_i32_61 : i32 to vector<8x256xi32>
    %152 = arith.cmpi slt, %102, %151 : vector<8x256xi32>
    %153 = arith.select %152, %150, %149 : vector<8x256xi1>, vector<8x256xf32>
    %154 = tpu.concatenate %128, %101, %153 in 0 : vector<8x256xf32>, vector<8x256xf32>, vector<8x256xf32> -> vector<24x256xf32>
    %155 = arith.truncf %154 : vector<24x256xf32> to vector<24x256xbf16>
    %c0_62 = arith.constant 0 : index
    %c0_63 = arith.constant 0 : index
    %156 = vector.load %arg8[%c0_62, %c0_63] : memref<8x24xbf16, #tpu.memory_space<vmem>>, vector<8x24xbf16>
    %cst_64 = arith.constant dense<0.000000e+00> : vector<8x256xf32>
    %157 = tpu.matmul %156, %155, %cst_64 {dimension_numbers = #tpu.dot_dimension_numbers<[1], [0], [0], [1], [0, 0, 1, 1], [], []>} : vector<8x24xbf16>, vector<24x256xbf16>, vector<8x256xf32> -> vector<8x256xf32>
    %c0_65 = arith.constant 0 : index
    %c0_66 = arith.constant 0 : index
    %158 = vector.load %arg9[%c0_65, %c0_66] : memref<8x1xf32, #tpu.memory_space<vmem>>, vector<8x1xf32>
    %159 = vector.broadcast %158 : vector<8x1xf32> to vector<8x256xf32>
    %160 = arith.addf %157, %159 : vector<8x256xf32>
    %cst_67 = arith.constant 0.000000e+00 : f32
    %161 = vector.broadcast %cst_67 : f32 to vector<8x256xf32>
    %162 = arith.maximumf %160, %161 : vector<8x256xf32>
    %c127_i32_68 = arith.constant 127 : i32
    %163 = tpu.dynamic_rotate %162 by %c127_i32_68 dim 1 : vector<8x256xf32>, i32 -> vector<8x256xf32>
    %c128_i32_69 = arith.constant 128 : i32
    %c0_i32_70 = arith.constant 0 : i32
    %164 = arith.cmpi eq, %c128_i32_69, %c0_i32_70 : i32
    %c1_i32_71 = arith.constant 1 : i32
    %165 = arith.select %164, %c1_i32_71, %c128_i32_69 : i32
    %166 = vector.broadcast %165 : i32 to vector<8x256xi32>
    %167 = arith.remsi %103, %166 : vector<8x256xi32>
    %c0_i32_72 = arith.constant 0 : i32
    %168 = vector.broadcast %c0_i32_72 : i32 to vector<8x256xi32>
    %169 = arith.cmpi ne, %167, %168 : vector<8x256xi32>
    %c0_i32_73 = arith.constant 0 : i32
    %170 = vector.broadcast %c0_i32_73 : i32 to vector<8x256xi32>
    %171 = arith.cmpi slt, %167, %170 : vector<8x256xi32>
    %c0_i32_74 = arith.constant 0 : i32
    %172 = arith.cmpi slt, %165, %c0_i32_74 : i32
    %173 = vector.broadcast %172 : i1 to vector<8x256xi1>
    %174 = vector.broadcast %173 : vector<8x256xi1> to vector<8x256xi1>
    %175 = arith.xori %171, %174 : vector<8x256xi1>
    %176 = arith.andi %175, %169 : vector<8x256xi1>
    %177 = vector.broadcast %165 : i32 to vector<8x256xi32>
    %178 = arith.addi %167, %177 : vector<8x256xi32>
    %179 = arith.select %176, %178, %167 : vector<8x256xi1>, vector<8x256xi32>
    %c127_i32_75 = arith.constant 127 : i32
    %180 = vector.broadcast %c127_i32_75 : i32 to vector<8x256xi32>
    %181 = arith.cmpi eq, %179, %180 : vector<8x256xi32>
    %cst_76 = arith.constant 0.000000e+00 : f32
    %182 = vector.broadcast %cst_76 : f32 to vector<8x256xf32>
    %183 = arith.select %181, %182, %163 : vector<8x256xi1>, vector<8x256xf32>
    %c128_i32_77 = arith.constant 128 : i32
    %184 = tpu.dynamic_rotate %162 by %c128_i32_77 dim 1 : vector<8x256xf32>, i32 -> vector<8x256xf32>
    %c128_i32_78 = arith.constant 128 : i32
    %185 = vector.broadcast %c128_i32_78 : i32 to vector<8x256xi32>
    %186 = arith.cmpi slt, %103, %185 : vector<8x256xi32>
    %187 = arith.select %186, %184, %183 : vector<8x256xi1>, vector<8x256xf32>
    %188 = tpu.concatenate %162, %187 in 0 : vector<8x256xf32>, vector<8x256xf32> -> vector<16x256xf32>
    %189 = arith.truncf %188 : vector<16x256xf32> to vector<16x256xbf16>
    %c0_79 = arith.constant 0 : index
    %c0_80 = arith.constant 0 : index
    %190 = vector.load %arg10[%c0_79, %c0_80] : memref<16x16xbf16, #tpu.memory_space<vmem>>, vector<16x16xbf16>
    %cst_81 = arith.constant dense<0.000000e+00> : vector<16x256xf32>
    %191 = tpu.matmul %190, %189, %cst_81 {dimension_numbers = #tpu.dot_dimension_numbers<[1], [0], [0], [1], [0, 0, 1, 1], [], []>} : vector<16x16xbf16>, vector<16x256xbf16>, vector<16x256xf32> -> vector<16x256xf32>
    %c0_82 = arith.constant 0 : index
    %c0_83 = arith.constant 0 : index
    %192 = vector.load %arg11[%c0_82, %c0_83] : memref<16x1xf32, #tpu.memory_space<vmem>>, vector<16x1xf32>
    %193 = vector.broadcast %192 : vector<16x1xf32> to vector<16x256xf32>
    %194 = arith.addf %191, %193 : vector<16x256xf32>
    %195 = vector.extract_strided_slice %194 {offsets = [0, 0], sizes = [8, 128], strides = [1, 1]} : vector<16x256xf32> to vector<8x128xf32>
    %196 = vector.extract_strided_slice %194 {offsets = [8, 0], sizes = [8, 128], strides = [1, 1]} : vector<16x256xf32> to vector<8x128xf32>
    %197 = vector.extract_strided_slice %194 {offsets = [0, 128], sizes = [8, 128], strides = [1, 1]} : vector<16x256xf32> to vector<8x128xf32>
    %198 = vector.extract_strided_slice %194 {offsets = [8, 128], sizes = [8, 128], strides = [1, 1]} : vector<16x256xf32> to vector<8x128xf32>
    %199 = tpu.concatenate %195, %196, %197, %198 in 1 : vector<8x128xf32>, vector<8x128xf32>, vector<8x128xf32>, vector<8x128xf32> -> vector<8x512xf32>
    %c0_84 = arith.constant 0 : index
    %c0_85 = arith.constant 0 : index
    %200 = vector.load %arg12[%c0_84, %c0_85] : memref<4x8xbf16, #tpu.memory_space<vmem>>, vector<4x8xbf16>
    %201 = arith.truncf %199 : vector<8x512xf32> to vector<8x512xbf16>
    %cst_86 = arith.constant dense<0.000000e+00> : vector<4x512xf32>
    %202 = tpu.matmul %200, %201, %cst_86 {dimension_numbers = #tpu.dot_dimension_numbers<[1], [0], [0], [1], [0, 0, 1, 1], [], []>} : vector<4x8xbf16>, vector<8x512xbf16>, vector<4x512xf32> -> vector<4x512xf32>
    %c0_87 = arith.constant 0 : index
    %c0_88 = arith.constant 0 : index
    %203 = vector.load %arg13[%c0_87, %c0_88] : memref<4x1xf32, #tpu.memory_space<vmem>>, vector<4x1xf32>
    %204 = vector.broadcast %203 : vector<4x1xf32> to vector<4x512xf32>
    %205 = arith.addf %202, %204 : vector<4x512xf32>
    %cst_89 = arith.constant 0.000000e+00 : f32
    %206 = vector.broadcast %cst_89 : f32 to vector<4x512xf32>
    %207 = arith.subf %206, %205 : vector<4x512xf32>
    %208 = math.exp %207 : vector<4x512xf32>
    %cst_90 = arith.constant 1.000000e+00 : f32
    %209 = vector.broadcast %cst_90 : f32 to vector<4x512xf32>
    %210 = arith.addf %209, %208 : vector<4x512xf32>
    %211 = tpu.reciprocal %210 {approx = true} : vector<4x512xf32> -> vector<4x512xf32>
    %212 = vector.extract_strided_slice %211 {offsets = [0, 0], sizes = [4, 128], strides = [1, 1]} : vector<4x512xf32> to vector<4x128xf32>
    %c0_91 = arith.constant 0 : index
    %c0_92 = arith.constant 0 : index
    %c0_93 = arith.constant 0 : index
    %213 = vector.load %arg14[%c0_91, %c0_92, %c0_93] : memref<1x4x512xf32, #tpu.memory_space<vmem>>, vector<1x4x128xf32>
    %214 = vector.shape_cast %213 : vector<1x4x128xf32> to vector<4x128xf32>
    %215 = vector.shape_cast %212 : vector<4x128xf32> to vector<1x4x128xf32>
    tpu.vector_store %arg14[%c0_91, %c0_92, %c0_93], %215 {strides = array<i32>} : memref<1x4x512xf32, #tpu.memory_space<vmem>>, vector<1x4x128xf32>,
    %216 = vector.extract_strided_slice %211 {offsets = [0, 128], sizes = [4, 128], strides = [1, 1]} : vector<4x512xf32> to vector<4x128xf32>
    %c0_94 = arith.constant 0 : index
    %c0_95 = arith.constant 0 : index
    %c128 = arith.constant 128 : index
    %217 = vector.load %arg14[%c0_94, %c0_95, %c128] : memref<1x4x512xf32, #tpu.memory_space<vmem>>, vector<1x4x128xf32>
    %218 = vector.shape_cast %217 : vector<1x4x128xf32> to vector<4x128xf32>
    %219 = vector.shape_cast %216 : vector<4x128xf32> to vector<1x4x128xf32>
    tpu.vector_store %arg14[%c0_94, %c0_95, %c128], %219 {strides = array<i32>} : memref<1x4x512xf32, #tpu.memory_space<vmem>>, vector<1x4x128xf32>,
    %220 = vector.extract_strided_slice %211 {offsets = [0, 256], sizes = [4, 128], strides = [1, 1]} : vector<4x512xf32> to vector<4x128xf32>
    %c0_96 = arith.constant 0 : index
    %c0_97 = arith.constant 0 : index
    %c256 = arith.constant 256 : index
    %221 = vector.load %arg14[%c0_96, %c0_97, %c256] : memref<1x4x512xf32, #tpu.memory_space<vmem>>, vector<1x4x128xf32>
    %222 = vector.shape_cast %221 : vector<1x4x128xf32> to vector<4x128xf32>
    %223 = vector.shape_cast %220 : vector<4x128xf32> to vector<1x4x128xf32>
    tpu.vector_store %arg14[%c0_96, %c0_97, %c256], %223 {strides = array<i32>} : memref<1x4x512xf32, #tpu.memory_space<vmem>>, vector<1x4x128xf32>,
    %224 = vector.extract_strided_slice %211 {offsets = [0, 384], sizes = [4, 128], strides = [1, 1]} : vector<4x512xf32> to vector<4x128xf32>
    %c0_98 = arith.constant 0 : index
    %c0_99 = arith.constant 0 : index
    %c384 = arith.constant 384 : index
    %225 = vector.load %arg14[%c0_98, %c0_99, %c384] : memref<1x4x512xf32, #tpu.memory_space<vmem>>, vector<1x4x128xf32>
    %226 = vector.shape_cast %225 : vector<1x4x128xf32> to vector<4x128xf32>
    %227 = vector.shape_cast %224 : vector<4x128xf32> to vector<1x4x128xf32>
    tpu.vector_store %arg14[%c0_98, %c0_99, %c384], %227 {strides = array<i32>} : memref<1x4x512xf32, #tpu.memory_space<vmem>>, vector<1x4x128xf32>,
    return
  }
  func.func @transform_0(%arg0: i32) -> (i32, i32, i32) {
    %c0_i32 = arith.constant 0 : i32
    %c0_i32_0 = arith.constant 0 : i32
    %c0_i32_1 = arith.constant 0 : i32
    return %arg0, %c0_i32, %c0_i32_0 : i32, i32, i32
  }
  func.func @transform_1(%arg0: i32) -> (i32, i32) {
    %c0_i32 = arith.constant 0 : i32
    %c0_i32_0 = arith.constant 0 : i32
    %c0_i32_1 = arith.constant 0 : i32
    return %c0_i32, %c0_i32_0 : i32, i32
  }
  func.func @transform_2(%arg0: i32) -> (i32, i32) {
    %c0_i32 = arith.constant 0 : i32
    %c0_i32_0 = arith.constant 0 : i32
    %c0_i32_1 = arith.constant 0 : i32
    return %c0_i32, %c0_i32_0 : i32, i32
  }
  func.func @transform_3(%arg0: i32) -> (i32, i32) {
    %c0_i32 = arith.constant 0 : i32
    %c0_i32_0 = arith.constant 0 : i32
    %c0_i32_1 = arith.constant 0 : i32
    return %c0_i32, %c0_i32_0 : i32, i32
  }
  func.func @transform_4(%arg0: i32) -> (i32, i32) {
    %c0_i32 = arith.constant 0 : i32
    %c0_i32_0 = arith.constant 0 : i32
    %c0_i32_1 = arith.constant 0 : i32
    return %c0_i32, %c0_i32_0 : i32, i32
  }
  func.func @transform_5(%arg0: i32) -> (i32, i32) {
    %c0_i32 = arith.constant 0 : i32
    %c0_i32_0 = arith.constant 0 : i32
    %c0_i32_1 = arith.constant 0 : i32
    return %c0_i32, %c0_i32_0 : i32, i32
  }
  func.func @transform_6(%arg0: i32) -> (i32, i32) {
    %c0_i32 = arith.constant 0 : i32
    %c0_i32_0 = arith.constant 0 : i32
    %c0_i32_1 = arith.constant 0 : i32
    return %c0_i32, %c0_i32_0 : i32, i32
  }
  func.func @transform_7(%arg0: i32) -> (i32, i32) {
    %c0_i32 = arith.constant 0 : i32
    %c0_i32_0 = arith.constant 0 : i32
    %c0_i32_1 = arith.constant 0 : i32
    return %c0_i32, %c0_i32_0 : i32, i32
  }
  func.func @transform_8(%arg0: i32) -> (i32, i32) {
    %c0_i32 = arith.constant 0 : i32
    %c0_i32_0 = arith.constant 0 : i32
    %c0_i32_1 = arith.constant 0 : i32
    return %c0_i32, %c0_i32_0 : i32, i32
  }
  func.func @transform_9(%arg0: i32) -> (i32, i32) {
    %c0_i32 = arith.constant 0 : i32
    %c0_i32_0 = arith.constant 0 : i32
    %c0_i32_1 = arith.constant 0 : i32
    return %c0_i32, %c0_i32_0 : i32, i32
  }
  func.func @transform_10(%arg0: i32) -> (i32, i32) {
    %c0_i32 = arith.constant 0 : i32
    %c0_i32_0 = arith.constant 0 : i32
    %c0_i32_1 = arith.constant 0 : i32
    return %c0_i32, %c0_i32_0 : i32, i32
  }
  func.func @transform_11(%arg0: i32) -> (i32, i32) {
    %c0_i32 = arith.constant 0 : i32
    %c0_i32_0 = arith.constant 0 : i32
    %c0_i32_1 = arith.constant 0 : i32
    return %c0_i32, %c0_i32_0 : i32, i32
  }
  func.func @transform_12(%arg0: i32) -> (i32, i32) {
    %c0_i32 = arith.constant 0 : i32
    %c0_i32_0 = arith.constant 0 : i32
    %c0_i32_1 = arith.constant 0 : i32
    return %c0_i32, %c0_i32_0 : i32, i32
  }
  func.func @transform_13(%arg0: i32) -> (i32, i32, i32) {
    %c0_i32 = arith.constant 0 : i32
    %c0_i32_0 = arith.constant 0 : i32
    %c0_i32_1 = arith.constant 0 : i32
    return %arg0, %c0_i32, %c0_i32_0 : i32, i32, i32
  }
}

</mosaic_0001>

<llo_original>
// kernel: tpu_custom_call.1
$region0: #{tpu_custom_call.1}
  #allocation0 [shape = 'u32[]', space=smem, size = 0x4, offset = 0x4, fixed_abs, tag = 'smem constant byte address 0x4 - core index']
  #allocation1 [shape = 'u32[144,128]{1,0:T(1,128)}', space=vmem, size = 0x12000, scoped, tag = 'internal scratch']
  %s0 = inlined_call_operand.vmem [shape: f32[2,1,32], index: 0, kind: input, shape index: {}]
  %s1 = inlined_call_operand.hbm [shape: bf16[32,1024], index: 1, kind: input, shape index: {}]
  %s2 = inlined_call_operand.vmem [shape: f32[1,1024], index: 2, kind: input, shape index: {}]
  %s3 = inlined_call_operand.vmem [shape: bf16[8,24], index: 3, kind: input, shape index: {}]
  %s4 = inlined_call_operand.vmem [shape: f32[8,1], index: 4, kind: input, shape index: {}]
  %s5 = inlined_call_operand.vmem [shape: bf16[16,16], index: 5, kind: input, shape index: {}]
  %s6 = inlined_call_operand.vmem [shape: f32[16,1], index: 6, kind: input, shape index: {}]
  %s7 = inlined_call_operand.vmem [shape: bf16[8,24], index: 7, kind: input, shape index: {}]
  %s8 = inlined_call_operand.vmem [shape: f32[8,1], index: 8, kind: input, shape index: {}]
  %s9 = inlined_call_operand.vmem [shape: bf16[16,16], index: 9, kind: input, shape index: {}]
  %s10 = inlined_call_operand.vmem [shape: f32[16,1], index: 10, kind: input, shape index: {}]
  %s11 = inlined_call_operand.vmem [shape: bf16[4,8], index: 11, kind: input, shape index: {}]
  %s12 = inlined_call_operand.vmem [shape: f32[4,1], index: 12, kind: input, shape index: {}]
  %s13 = inlined_call_operand.hbm [shape: f32[2,4,512], index: 13, kind: output, shape index: {}]
  %s14 = sld [smem:[#allocation0]]
  $region89: #{tpu_custom_call.1} parent=0
    _
  %s16 = ssub.s32 1, %s14
  %s17 = scalar_select 0, %s16, %s14
  $region1: #{tpu_custom_call.1} parent=0
    #allocation2 [shape = 'u8[65536]{0}', space=vmem, size = 0x10000, scoped, tag = 'input window, operand 1, single buffered']
    #allocation3 [shape = 's32[2]{0}', space=sflag, size = 0x8, scoped, tag = 'scoped memory for tpu_custom_call.1']
    #allocation4 [shape = 's32[2]{0}', space=sflag, size = 0x8, scoped, tag = 'scoped memory for tpu_custom_call.1']
    #allocation5 [shape = 'u8[16384]{0}', space=vmem, size = 0x4000, scoped, tag = 'output window, operand 0']
    %18 = vsyncpa [#allocation3], 0
    %19 = vsyncpa [#allocation4], 0
    %s20 = scalar_lea.sflag [#allocation4], 1
    %21 = vsyncpa %s20, 0
    loop: start=0, step=1, limit=4
    $region2: #{tpu_custom_call.1} parent=1 // loop_pre_header
      _
    $region3: #{tpu_custom_call.1} parent=1 // loop_header
      %s23 = sphi 0, %s27
      %p24 = scmp.ge.s32.totalorder %s23, 4
      %s33 = sphi 0, %s35
      %s36 = sphi 0, %s33
      %s37 = sphi 0, %s36
      %s53 = sphi 0, %s37
      %s57 = sphi 0, %s57
      %s59 = sphi 0, %s57
      %s60 = sphi 0, %s59
      %s74 = sphi 0, %s60
      %s78 = sphi 0, %s78
      %s80 = sphi 0, %s78
      %s81 = sphi 0, %s80
      %s95 = sphi 0, %s81
      %s99 = sphi 0, %s99
      %s101 = sphi 0, %s99
      %s102 = sphi 0, %s101
      %s116 = sphi 0, %s102
      %s120 = sphi 0, %s120
      %s122 = sphi 0, %s120
      %s123 = sphi 0, %s122
      %s137 = sphi 0, %s123
      %s141 = sphi 0, %s141
      %s143 = sphi 0, %s141
      %s144 = sphi 0, %s143
      %s158 = sphi 0, %s144
      %s162 = sphi 0, %s162
      %s164 = sphi 0, %s162
      %s165 = sphi 0, %s164
      %s179 = sphi 0, %s165
      %s183 = sphi 0, %s183
      %s185 = sphi 0, %s183
      %s186 = sphi 0, %s185
      %s200 = sphi 0, %s186
      %s204 = sphi 0, %s204
      %s206 = sphi 0, %s204
      %s207 = sphi 0, %s206
      %s221 = sphi 0, %s207
      %s225 = sphi 0, %s225
      %s227 = sphi 0, %s225
      %s228 = sphi 0, %s227
      %s242 = sphi 0, %s228
      %s246 = sphi 0, %s246
      %s248 = sphi 0, %s246
      %s249 = sphi 0, %s248
      %s263 = sphi 0, %s249
      %s267 = sphi 0, %s267
      %s269 = sphi 0, %s267
      %s270 = sphi 0, %s269
      %s284 = sphi 0, %s270
      %s288 = sphi 0, %s288
      %s290 = sphi 0, %s288
      %s291 = sphi 0, %s290
      %s305 = sphi 0, %s291
      %s311 = sphi 0, %s313
      %s314 = sphi 0, %s311
      %s315 = sphi 0, %s314
      %s331 = sphi 0, %s315
    $region4: #{tpu_custom_call.1} parent=1 // loop_header_branch
      %26 = sbr.rel (%p24) target = $region8
    $region5: #{tpu_custom_call.1} parent=1 // loop_body
      %s28 = ssub.s32 %s23, 1
      %s29 = ssub.s32 %s23, 2
      %s30 = sadd.s32 %s23, 1
      %s31 = ssub.s32 %s23, %s30
      %p32 = scmp.eq.s32.totalorder %s31, 0
      %s34 = sadd.s32 %s33, 1
      %s35 = scalar_select %p32, %s33, %s34
      %p38 = pneg %p32
      %p39 = scmp.eq.s32.totalorder %s23, 1
      %p40 = por %p38, %p39
      %p41 = scmp.ne.s32.totalorder %s33, %s36
      %p42 = scmp.eq.s32.totalorder %s23, 0
      %p43 = por %p41, %p42
      %p44 = scmp.ne.s32.totalorder %s33, %s36
      %p45 = scmp.eq.s32.totalorder %s28, 1
      %p46 = por %p44, %p45
      %p47 = scmp.ne.s32.totalorder %s36, %s37
      %p48 = scmp.eq.s32.totalorder %s28, 0
      %p49 = por %p47, %p48
      %p50 = scmp.ne.s32.totalorder %s36, %s37
      %p51 = scmp.eq.s32.totalorder %s29, 1
      %p52 = por %p50, %p51
      %p54 = scmp.ne.s32.totalorder %s37, %s53
      %p55 = scmp.eq.s32.totalorder %s29, 0
      %p56 = por %p54, %p55
      %s58 = sadd.s32 %s57, 1
      %p61 = scmp.eq.s32.totalorder %s23, 1
      %p62 = scmp.ne.s32.totalorder %s57, %s59
      %p63 = scmp.eq.s32.totalorder %s23, 0
      %p64 = por %p62, %p63
      %p65 = scmp.ne.s32.totalorder %s57, %s59
      %p66 = scmp.eq.s32.totalorder %s28, 1
      %p67 = por %p65, %p66
      %p68 = scmp.ne.s32.totalorder %s59, %s60
      %p69 = scmp.eq.s32.totalorder %s28, 0
      %p70 = por %p68, %p69
      %p71 = scmp.ne.s32.totalorder %s59, %s60
      %p72 = scmp.eq.s32.totalorder %s29, 1
      %p73 = por %p71, %p72
      %p75 = scmp.ne.s32.totalorder %s60, %s74
      %p76 = scmp.eq.s32.totalorder %s29, 0
      %p77 = por %p75, %p76
      %s79 = sadd.s32 %s78, 1
      %p82 = scmp.eq.s32.totalorder %s23, 1
      %p83 = scmp.ne.s32.totalorder %s78, %s80
      %p84 = scmp.eq.s32.totalorder %s23, 0
      %p85 = por %p83, %p84
      %p86 = scmp.ne.s32.totalorder %s78, %s80
      %p87 = scmp.eq.s32.totalorder %s28, 1
      %p88 = por %p86, %p87
      %p89 = scmp.ne.s32.totalorder %s80, %s81
      %p90 = scmp.eq.s32.totalorder %s28, 0
      %p91 = por %p89, %p90
      %p92 = scmp.ne.s32.totalorder %s80, %s81
      %p93 = scmp.eq.s32.totalorder %s29, 1
      %p94 = por %p92, %p93
      %p96 = scmp.ne.s32.totalorder %s81, %s95
      %p97 = scmp.eq.s32.totalorder %s29, 0
      %p98 = por %p96, %p97
      %s100 = sadd.s32 %s99, 1
      %p103 = scmp.eq.s32.totalorder %s23, 1
      %p104 = scmp.ne.s32.totalorder %s99, %s101
      %p105 = scmp.eq.s32.totalorder %s23, 0
      %p106 = por %p104, %p105
      %p107 = scmp.ne.s32.totalorder %s99, %s101
      %p108 = scmp.eq.s32.totalorder %s28, 1
      %p109 = por %p107, %p108
      %p110 = scmp.ne.s32.totalorder %s101, %s102
      %p111 = scmp.eq.s32.totalorder %s28, 0
      %p112 = por %p110, %p111
      %p113 = scmp.ne.s32.totalorder %s101, %s102
      %p114 = scmp.eq.s32.totalorder %s29, 1
      %p115 = por %p113, %p114
      %p117 = scmp.ne.s32.totalorder %s102, %s116
      %p118 = scmp.eq.s32.totalorder %s29, 0
      %p119 = por %p117, %p118
      %s121 = sadd.s32 %s120, 1
      %p124 = scmp.eq.s32.totalorder %s23, 1
      %p125 = scmp.ne.s32.totalorder %s120, %s122
      %p126 = scmp.eq.s32.totalorder %s23, 0
      %p127 = por %p125, %p126
      %p128 = scmp.ne.s32.totalorder %s120, %s122
      %p129 = scmp.eq.s32.totalorder %s28, 1
      %p130 = por %p128, %p129
      %p131 = scmp.ne.s32.totalorder %s122, %s123
      %p132 = scmp.eq.s32.totalorder %s28, 0
      %p133 = por %p131, %p132
      %p134 = scmp.ne.s32.totalorder %s122, %s123
      %p135 = scmp.eq.s32.totalorder %s29, 1
      %p136 = por %p134, %p135
      %p138 = scmp.ne.s32.totalorder %s123, %s137
      %p139 = scmp.eq.s32.totalorder %s29, 0
      %p140 = por %p138, %p139
      %s142 = sadd.s32 %s141, 1
      %p145 = scmp.eq.s32.totalorder %s23, 1
      %p146 = scmp.ne.s32.totalorder %s141, %s143
      %p147 = scmp.eq.s32.totalorder %s23, 0
      %p148 = por %p146, %p147
      %p149 = scmp.ne.s32.totalorder %s141, %s143
      %p150 = scmp.eq.s32.totalorder %s28, 1
      %p151 = por %p149, %p150
      %p152 = scmp.ne.s32.totalorder %s143, %s144
      %p153 = scmp.eq.s32.totalorder %s28, 0
      %p154 = por %p152, %p153
      %p155 = scmp.ne.s32.totalorder %s143, %s144
      %p156 = scmp.eq.s32.totalorder %s29, 1
      %p157 = por %p155, %p156
      %p159 = scmp.ne.s32.totalorder %s144, %s158
      %p160 = scmp.eq.s32.totalorder %s29, 0
      %p161 = por %p159, %p160
      %s163 = sadd.s32 %s162, 1
      %p166 = scmp.eq.s32.totalorder %s23, 1
      %p167 = scmp.ne.s32.totalorder %s162, %s164
      %p168 = scmp.eq.s32.totalorder %s23, 0
      %p169 = por %p167, %p168
      %p170 = scmp.ne.s32.totalorder %s162, %s164
      %p171 = scmp.eq.s32.totalorder %s28, 1
      %p172 = por %p170, %p171
      %p173 = scmp.ne.s32.totalorder %s164, %s165
      %p174 = scmp.eq.s32.totalorder %s28, 0
      %p175 = por %p173, %p174
      %p176 = scmp.ne.s32.totalorder %s164, %s165
      %p177 = scmp.eq.s32.totalorder %s29, 1
      %p178 = por %p176, %p177
      %p180 = scmp.ne.s32.totalorder %s165, %s179
      %p181 = scmp.eq.s32.totalorder %s29, 0
      %p182 = por %p180, %p181
      %s184 = sadd.s32 %s183, 1
      %p187 = scmp.eq.s32.totalorder %s23, 1
      %p188 = scmp.ne.s32.totalorder %s183, %s185
      %p189 = scmp.eq.s32.totalorder %s23, 0
      %p190 = por %p188, %p189
      %p191 = scmp.ne.s32.totalorder %s183, %s185
      %p192 = scmp.eq.s32.totalorder %s28, 1
      %p193 = por %p191, %p192
      %p194 = scmp.ne.s32.totalorder %s185, %s186
      %p195 = scmp.eq.s32.totalorder %s28, 0
      %p196 = por %p194, %p195
      %p197 = scmp.ne.s32.totalorder %s185, %s186
      %p198 = scmp.eq.s32.totalorder %s29, 1
      %p199 = por %p197, %p198
      %p201 = scmp.ne.s32.totalorder %s186, %s200
      %p202 = scmp.eq.s32.totalorder %s29, 0
      %p203 = por %p201, %p202
      %s205 = sadd.s32 %s204, 1
      %p208 = scmp.eq.s32.totalorder %s23, 1
      %p209 = scmp.ne.s32.totalorder %s204, %s206
      %p210 = scmp.eq.s32.totalorder %s23, 0
      %p211 = por %p209, %p210
      %p212 = scmp.ne.s32.totalorder %s204, %s206
      %p213 = scmp.eq.s32.totalorder %s28, 1
      %p214 = por %p212, %p213
      %p215 = scmp.ne.s32.totalorder %s206, %s207
      %p216 = scmp.eq.s32.totalorder %s28, 0
      %p217 = por %p215, %p216
      %p218 = scmp.ne.s32.totalorder %s206, %s207
      %p219 = scmp.eq.s32.totalorder %s29, 1
      %p220 = por %p218, %p219
      %p222 = scmp.ne.s32.totalorder %s207, %s221
      %p223 = scmp.eq.s32.totalorder %s29, 0
      %p224 = por %p222, %p223
      %s226 = sadd.s32 %s225, 1
      %p229 = scmp.eq.s32.totalorder %s23, 1
      %p230 = scmp.ne.s32.totalorder %s225, %s227
      %p231 = scmp.eq.s32.totalorder %s23, 0
      %p232 = por %p230, %p231
      %p233 = scmp.ne.s32.totalorder %s225, %s227
      %p234 = scmp.eq.s32.totalorder %s28, 1
      %p235 = por %p233, %p234
      %p236 = scmp.ne.s32.totalorder %s227, %s228
      %p237 = scmp.eq.s32.totalorder %s28, 0
      %p238 = por %p236, %p237
      %p239 = scmp.ne.s32.totalorder %s227, %s228
      %p240 = scmp.eq.s32.totalorder %s29, 1
      %p241 = por %p239, %p240
      %p243 = scmp.ne.s32.totalorder %s228, %s242
      %p244 = scmp.eq.s32.totalorder %s29, 0
      %p245 = por %p243, %p244
      %s247 = sadd.s32 %s246, 1
      %p250 = scmp.eq.s32.totalorder %s23, 1
      %p251 = scmp.ne.s32.totalorder %s246, %s248
      %p252 = scmp.eq.s32.totalorder %s23, 0
      %p253 = por %p251, %p252
      %p254 = scmp.ne.s32.totalorder %s246, %s248
      %p255 = scmp.eq.s32.totalorder %s28, 1
      %p256 = por %p254, %p255
      %p257 = scmp.ne.s32.totalorder %s248, %s249
      %p258 = scmp.eq.s32.totalorder %s28, 0
      %p259 = por %p257, %p258
      %p260 = scmp.ne.s32.totalorder %s248, %s249
      %p261 = scmp.eq.s32.totalorder %s29, 1
      %p262 = por %p260, %p261
      %p264 = scmp.ne.s32.totalorder %s249, %s263
      %p265 = scmp.eq.s32.totalorder %s29, 0
      %p266 = por %p264, %p265
      %s268 = sadd.s32 %s267, 1
      %p271 = scmp.eq.s32.totalorder %s23, 1
      %p272 = scmp.ne.s32.totalorder %s267, %s269
      %p273 = scmp.eq.s32.totalorder %s23, 0
      %p274 = por %p272, %p273
      %p275 = scmp.ne.s32.totalorder %s267, %s269
      %p276 = scmp.eq.s32.totalorder %s28, 1
      %p277 = por %p275, %p276
      %p278 = scmp.ne.s32.totalorder %s269, %s270
      %p279 = scmp.eq.s32.totalorder %s28, 0
      %p280 = por %p278, %p279
      %p281 = scmp.ne.s32.totalorder %s269, %s270
      %p282 = scmp.eq.s32.totalorder %s29, 1
      %p283 = por %p281, %p282
      %p285 = scmp.ne.s32.totalorder %s270, %s284
      %p286 = scmp.eq.s32.totalorder %s29, 0
      %p287 = por %p285, %p286
      %s289 = sadd.s32 %s288, 1
      %p292 = scmp.eq.s32.totalorder %s23, 1
      %p293 = scmp.ne.s32.totalorder %s288, %s290
      %p294 = scmp.eq.s32.totalorder %s23, 0
      %p295 = por %p293, %p294
      %p296 = scmp.ne.s32.totalorder %s288, %s290
      %p297 = scmp.eq.s32.totalorder %s28, 1
      %p298 = por %p296, %p297
      %p299 = scmp.ne.s32.totalorder %s290, %s291
      %p300 = scmp.eq.s32.totalorder %s28, 0
      %p301 = por %p299, %p300
      %p302 = scmp.ne.s32.totalorder %s290, %s291
      %p303 = scmp.eq.s32.totalorder %s29, 1
      %p304 = por %p302, %p303
      %p306 = scmp.ne.s32.totalorder %s291, %s305
      %p307 = scmp.eq.s32.totalorder %s29, 0
      %p308 = por %p306, %p307
      %s309 = ssub.s32 %s23, %s30
      %p310 = scmp.eq.s32.totalorder %s309, 0
      %s312 = sadd.s32 %s311, 1
      %s313 = scalar_select %p310, %s311, %s312
      %p316 = pneg %p310
      %p317 = scmp.eq.s32.totalorder %s23, 1
      %p318 = por %p316, %p317
      %p319 = scmp.ne.s32.totalorder %s311, %s314
      %p320 = scmp.eq.s32.totalorder %s23, 0
      %p321 = por %p319, %p320
      %p322 = scmp.ne.s32.totalorder %s311, %s314
      %p323 = scmp.eq.s32.totalorder %s28, 1
      %p324 = por %p322, %p323
      %p325 = scmp.ne.s32.totalorder %s314, %s315
      %p326 = scmp.eq.s32.totalorder %s28, 0
      %p327 = por %p325, %p326
      %p328 = scmp.ne.s32.totalorder %s314, %s315
      %p329 = scmp.eq.s32.totalorder %s29, 1
      %p330 = por %p328, %p329
      %p332 = scmp.ne.s32.totalorder %s315, %s331
      %p333 = scmp.eq.s32.totalorder %s29, 0
      %p334 = por %p332, %p333
      %p335 = scmp.le.s32.totalorder 1, %s23
      %p336 = scmp.lt.s32.totalorder %s23, 3
      %p337 = pnand %p335, %p336
      %p338 = pneg %p337
      // Predicated region
      $region9: #{tpu_custom_call.1} parent=5 // pred_check
        _
      $region10: #{tpu_custom_call.1} parent=5 // pred_check_branch
        %340 = sbr.rel (%p337) target = $region12
      $region11: #{tpu_custom_call.1} parent=5 // pred_region
        %s341 = ssub.s32 %s23, 1
        // Predicated region
        $region13: #{tpu_custom_call.1} parent=11 // pred_check
          %p342 = pneg %p70
        $region14: #{tpu_custom_call.1} parent=11 // pred_check_branch
          %344 = sbr.rel (%p342) target = $region16
        $region15: #{tpu_custom_call.1} parent=11 // pred_region
          %s346 = ssub.s32 2048, 2048
          %347 = vsyncadd [#allocation3], %s346
          %s348 = sshll.u32 [#allocation2], 4
          %s349 = int_to_ptr.vmem [resolvable:$true] %s348
          %354 = dma.hbm_to_vmem [thread:$0]  %s1, 2048, %s349, [#allocation3], 512, 512, 32
        $region16: #{tpu_custom_call.1} parent=11 // pred_fallthru
          _
        // Predicated region
        $region17: #{tpu_custom_call.1} parent=11 // pred_check
          %p355 = pneg %p91
        $region18: #{tpu_custom_call.1} parent=11 // pred_check_branch
          %357 = sbr.rel (%p355) target = $region20
        $region19: #{tpu_custom_call.1} parent=11 // pred_region
          _
        $region20: #{tpu_custom_call.1} parent=11 // pred_fallthru
          _
        // Predicated region
        $region21: #{tpu_custom_call.1} parent=11 // pred_check
          %p358 = pneg %p112
        $region22: #{tpu_custom_call.1} parent=11 // pred_check_branch
          %360 = sbr.rel (%p358) target = $region24
        $region23: #{tpu_custom_call.1} parent=11 // pred_region
          _
        $region24: #{tpu_custom_call.1} parent=11 // pred_fallthru
          _
        // Predicated region
        $region25: #{tpu_custom_call.1} parent=11 // pred_check
          %p361 = pneg %p133
        $region26: #{tpu_custom_call.1} parent=11 // pred_check_branch
          %363 = sbr.rel (%p361) target = $region28
        $region27: #{tpu_custom_call.1} parent=11 // pred_region
          _
        $region28: #{tpu_custom_call.1} parent=11 // pred_fallthru
          _
        // Predicated region
        $region29: #{tpu_custom_call.1} parent=11 // pred_check
          %p364 = pneg %p154
        $region30: #{tpu_custom_call.1} parent=11 // pred_check_branch
          %366 = sbr.rel (%p364) target = $region32
        $region31: #{tpu_custom_call.1} parent=11 // pred_region
          _
        $region32: #{tpu_custom_call.1} parent=11 // pred_fallthru
          _
        // Predicated region
        $region33: #{tpu_custom_call.1} parent=11 // pred_check
          %p367 = pneg %p175
        $region34: #{tpu_custom_call.1} parent=11 // pred_check_branch
          %369 = sbr.rel (%p367) target = $region36
        $region35: #{tpu_custom_call.1} parent=11 // pred_region
          _
        $region36: #{tpu_custom_call.1} parent=11 // pred_fallthru
          _
        // Predicated region
        $region37: #{tpu_custom_call.1} parent=11 // pred_check
          %p370 = pneg %p196
        $region38: #{tpu_custom_call.1} parent=11 // pred_check_branch
          %372 = sbr.rel (%p370) target = $region40
        $region39: #{tpu_custom_call.1} parent=11 // pred_region
          _
        $region40: #{tpu_custom_call.1} parent=11 // pred_fallthru
          _
        // Predicated region
        $region41: #{tpu_custom_call.1} parent=11 // pred_check
          %p373 = pneg %p217
        $region42: #{tpu_custom_call.1} parent=11 // pred_check_branch
          %375 = sbr.rel (%p373) target = $region44
        $region43: #{tpu_custom_call.1} parent=11 // pred_region
          _
        $region44: #{tpu_custom_call.1} parent=11 // pred_fallthru
          _
        // Predicated region
        $region45: #{tpu_custom_call.1} parent=11 // pred_check
          %p376 = pneg %p238
        $region46: #{tpu_custom_call.1} parent=11 // pred_check_branch
          %378 = sbr.rel (%p376) target = $region48
        $region47: #{tpu_custom_call.1} parent=11 // pred_region
          _
        $region48: #{tpu_custom_call.1} parent=11 // pred_fallthru
          _
        // Predicated region
        $region49: #{tpu_custom_call.1} parent=11 // pred_check
          %p379 = pneg %p259
        $region50: #{tpu_custom_call.1} parent=11 // pred_check_branch
          %381 = sbr.rel (%p379) target = $region52
        $region51: #{tpu_custom_call.1} parent=11 // pred_region
          _
        $region52: #{tpu_custom_call.1} parent=11 // pred_fallthru
          _
        // Predicated region
        $region53: #{tpu_custom_call.1} parent=11 // pred_check
          %p382 = pneg %p280
        $region54: #{tpu_custom_call.1} parent=11 // pred_check_branch
          %384 = sbr.rel (%p382) target = $region56
        $region55: #{tpu_custom_call.1} parent=11 // pred_region
          _
        $region56: #{tpu_custom_call.1} parent=11 // pred_fallthru
          _
        // Predicated region
        $region57: #{tpu_custom_call.1} parent=11 // pred_check
          %p385 = pneg %p301
        $region58: #{tpu_custom_call.1} parent=11 // pred_check_branch
          %387 = sbr.rel (%p385) target = $region60
        $region59: #{tpu_custom_call.1} parent=11 // pred_region
          _
        $region60: #{tpu_custom_call.1} parent=11 // pred_fallthru
          _
      $region12: #{tpu_custom_call.1} parent=5 // pred_fallthru
        _
      %p388 = scmp.lt.s32.totalorder %s23, 2
      // Predicated region
      $region61: #{tpu_custom_call.1} parent=5 // pred_check
        %p389 = pneg %p388
      $region62: #{tpu_custom_call.1} parent=5 // pred_check_branch
        %391 = sbr.rel (%p389) target = $region64
      $region63: #{tpu_custom_call.1} parent=5 // pred_region
        // Predicated region
        $region65: #{tpu_custom_call.1} parent=63 // pred_check
          %p392 = pneg %p43
        $region66: #{tpu_custom_call.1} parent=63 // pred_check_branch
          %394 = sbr.rel (%p392) target = $region68
        $region67: #{tpu_custom_call.1} parent=63 // pred_region
          %p395 = scmp.lt.s32.totalorder %s23, 1
          %s396 = scalar_select %p395, %s23, 1
          %s397 = scalar_lea.vmem %s0, %s396
        $region68: #{tpu_custom_call.1} parent=63 // pred_fallthru
          _
      $region64: #{tpu_custom_call.1} parent=5 // pred_fallthru
        _
      %p398 = scmp.le.s32.totalorder 1, %s23
      %p399 = scmp.lt.s32.totalorder %s23, 3
      %p400 = pnand %p398, %p399
      %p401 = pneg %p400
      // Predicated region
      $region69: #{tpu_custom_call.1} parent=5 // pred_check
        _
      $region70: #{tpu_custom_call.1} parent=5 // pred_check_branch
        %403 = sbr.rel (%p400) target = $region72
      $region71: #{tpu_custom_call.1} parent=5 // pred_region
        %s404 = ssub.s32 %s23, 1
        // Predicated region
        $region73: #{tpu_custom_call.1} parent=71 // pred_check
          %p405 = pneg %p70
        $region74: #{tpu_custom_call.1} parent=71 // pred_check_branch
          %407 = sbr.rel (%p405) target = $region76
        $region75: #{tpu_custom_call.1} parent=71 // pred_region
          %408 = dma.done [#allocation3], 2048
        $region76: #{tpu_custom_call.1} parent=71 // pred_fallthru
          _
        %p409 = scmp.lt.s32.totalorder %s28, 1
        %s410 = scalar_select %p409, %s28, 1
        %s411 = scalar_lea.vmem %s0, %s410
        %p412 = pneg %p49
        %p413 = pneg %p46
        %p414 = pneg %p70
        %p415 = pneg %p67
        %p416 = pneg %p91
        %p417 = pneg %p88
        %p418 = pneg %p112
        %p419 = pneg %p109
        %p420 = pneg %p133
        %p421 = pneg %p130
        %p422 = pneg %p154
        %p423 = pneg %p151
        %p424 = pneg %p175
        %p425 = pneg %p172
        %p426 = pneg %p196
        %p427 = pneg %p193
        %p428 = pneg %p217
        %p429 = pneg %p214
        %p430 = pneg %p238
        %p431 = pneg %p235
        %p432 = pneg %p259
        %p433 = pneg %p256
        %p434 = pneg %p280
        %p435 = pneg %p277
        %p436 = pneg %p301
        %p437 = pneg %p298
        %p438 = pneg %p327
        %p439 = pneg %p324
        %s440 = sand.u32 %s314, 1
        %s441 = scalar_lea.sflag [#allocation4], %s440
        %s442 = sand.u32 %s314, 1
        %s443 = smul.addr %s442, 16
        %s444 = scalar_lea.vmem [#allocation5], %s443
        %p445 = scmp.lt.s32.totalorder %s28, 1
        %s446 = scalar_select %p445, %s28, 1
        %s447 = scalar_lea.vmem %s0, %s446
        %v449 = vld [vmem:[%s447] sm:$0x1]
        %v450 = vpack.c.bf16 %v449, %v449
        %v451 = vld [vmem:[#allocation2] sm:$0xff]
        %v452 = vld [vmem:[#allocation2 + $0x8] sm:$0xff]
        %v453 = vld [vmem:[#allocation2 + $0x10] sm:$0xff]
        %v454 = vld [vmem:[#allocation2 + $0x18] sm:$0xff]
        %v455 = vld [vmem:[#allocation2 + $0x20] sm:$0xff]
        %v456 = vld [vmem:[#allocation2 + $0x28] sm:$0xff]
        %v457 = vld [vmem:[#allocation2 + $0x30] sm:$0xff]
        %v458 = vld [vmem:[#allocation2 + $0x38] sm:$0xff]
        %v459 = vld [vmem:[#allocation2 + $0x40] sm:$0xff]
        %v460 = vld [vmem:[#allocation2 + $0x48] sm:$0xff]
        %v461 = vld [vmem:[#allocation2 + $0x50] sm:$0xff]
        %v462 = vld [vmem:[#allocation2 + $0x58] sm:$0xff]
        %v463 = vld [vmem:[#allocation2 + $0x60] sm:$0xff]
        %v464 = vld [vmem:[#allocation2 + $0x68] sm:$0xff]
        %v465 = vld [vmem:[#allocation2 + $0x70] sm:$0xff]
        %v466 = vld [vmem:[#allocation2 + $0x78] sm:$0xff]
        %v467 = vld [vmem:[%s2] sm:$0xff]
        %v484 = vunpack.c.l.b16 %v451
        %v485 = vunpack.c.h.b16 %v451
        %v486 = vunpack.c.l.b16 %v452
        %v487 = vunpack.c.h.b16 %v452
        %v488 = vunpack.c.l.b16 %v453
        %v489 = vunpack.c.h.b16 %v453
        %v490 = vunpack.c.l.b16 %v454
        %v491 = vunpack.c.h.b16 %v454
        %v492 = vunpack.c.l.b16 %v455
        %v493 = vunpack.c.h.b16 %v455
        %v494 = vunpack.c.l.b16 %v456
        %v495 = vunpack.c.h.b16 %v456
        %v496 = vunpack.c.l.b16 %v457
        %v497 = vunpack.c.h.b16 %v457
        %v498 = vunpack.c.l.b16 %v458
        %v499 = vunpack.c.h.b16 %v458
        %v500 = vunpack.c.l.b16 %v459
        %v501 = vunpack.c.h.b16 %v459
        %v502 = vunpack.c.l.b16 %v460
        %v503 = vunpack.c.h.b16 %v460
        %v504 = vunpack.c.l.b16 %v461
        %v505 = vunpack.c.h.b16 %v461
        %v506 = vunpack.c.l.b16 %v462
        %v507 = vunpack.c.h.b16 %v462
        %v508 = vunpack.c.l.b16 %v463
        %v509 = vunpack.c.h.b16 %v463
        %v510 = vunpack.c.l.b16 %v464
        %v511 = vunpack.c.h.b16 %v464
        %v512 = vunpack.c.l.b16 %v465
        %v513 = vunpack.c.h.b16 %v465
        %v514 = vunpack.c.l.b16 %v466
        %v515 = vunpack.c.h.b16 %v466
        %v516 = vpack.c.b16 %v492, %v484
        %v517 = vpack.c.b16 %v493, %v485
        %v518 = vpack.c.b16 %v494, %v486
        %v519 = vpack.c.b16 %v495, %v487
        %v520 = vpack.c.b16 %v496, %v488
        %v521 = vpack.c.b16 %v497, %v489
        %v522 = vpack.c.b16 %v498, %v490
        %v523 = vpack.c.b16 %v499, %v491
        %v524 = vpack.c.b16 %v508, %v500
        %v525 = vpack.c.b16 %v509, %v501
        %v526 = vpack.c.b16 %v510, %v502
        %v527 = vpack.c.b16 %v511, %v503
        %v528 = vpack.c.b16 %v512, %v504
        %v529 = vpack.c.b16 %v513, %v505
        %v530 = vpack.c.b16 %v514, %v506
        %v531 = vpack.c.b16 %v515, %v507
        %v549 = vlaneseq
        %v550 = vshrl.u32 %v549, 7
        %v551 = vsub.s32 0, %v550
        %v552 = vrot.slane %v467, %v551
        %v553 = vlaneseq
        %v554 = vshrl.u32 %v553, 7
        %v555 = vsub.s32 1, %v554
        %v556 = vrot.slane %v467, %v555
        %v557 = vlaneseq
        %v558 = vshrl.u32 %v557, 7
        %v559 = vsub.s32 2, %v558
        %v560 = vrot.slane %v467, %v559
        %v561 = vlaneseq
        %v562 = vshrl.u32 %v561, 7
        %v563 = vsub.s32 3, %v562
        %v564 = vrot.slane %v467, %v563
        %v565 = vlaneseq
        %v566 = vshrl.u32 %v565, 7
        %v567 = vsub.s32 4, %v566
        %v568 = vrot.slane %v467, %v567
        %v569 = vlaneseq
        %v570 = vshrl.u32 %v569, 7
        %v571 = vsub.s32 5, %v570
        %v572 = vrot.slane %v467, %v571
        %v573 = vlaneseq
        %v574 = vshrl.u32 %v573, 7
        %v575 = vsub.s32 6, %v574
        %v576 = vrot.slane %v467, %v575
        %v577 = vlaneseq
        %v578 = vshrl.u32 %v577, 7
        %v579 = vsub.s32 7, %v578
        %v580 = vrot.slane %v467, %v579
        %vm589 = vcmask 261120
        %v591 = vsel %vm589, %v450, 0
        %593 = vmatprep.subr.bf16.mxu0 0
        %594 = vmatpush1.bf16.msra.mxu0 0
        %595 = vmatprep.subr.bf16.mxu0 0
        %596 = vmatpush1.bf16.msra.mxu0 0
        %597 = vmatprep.subr.bf16.mxu0 0
        %598 = vmatpush1.bf16.msra.mxu0 0
        %599 = vmatprep.subr.bf16.mxu0 0
        %600 = vmatpush1.bf16.msra.mxu0 0
        %601 = vmatprep.subr.bf16.mxu0 0
        %602 = vmatpush1.bf16.msra.mxu0 0
        %603 = vmatprep.subr.bf16.mxu0 0
        %604 = vmatpush1.bf16.msra.mxu0 0
        %605 = vmatprep.subr.bf16.mxu0 %v525
        %606 = vmatpush1.bf16.msra.mxu0 %v524
        %607 = vmatprep.subr.bf16.mxu0 %v517
        %608 = vmatpush1.bf16.msra.mxu0 %v516
        %609 = vmatprep.subr.bf16.mxu0 0
        %610 = vmatpush2.bf16.msra.mxu0 0
        %611 = vmatprep.subr.bf16.mxu0 0
        %612 = vmatpush2.bf16.msra.mxu0 0
        %613 = vmatprep.subr.bf16.mxu0 0
        %614 = vmatpush2.bf16.msra.mxu0 0
        %615 = vmatprep.subr.bf16.mxu0 0
        %616 = vmatpush2.bf16.msra.mxu0 0
        %617 = vmatprep.subr.bf16.mxu0 0
        %618 = vmatpush2.bf16.msra.mxu0 0
        %619 = vmatprep.subr.bf16.mxu0 0
        %620 = vmatpush2.bf16.msra.mxu0 0
        %621 = vmatprep.subr.bf16.mxu0 0
        %622 = vmatpush2.bf16.msra.mxu0 0
        %623 = vmatprep.subr.bf16.mxu0 0
        %624 = vmatpush2.bf16.msra.mxu0 0
        %625 = vmatprep.mubr.bf16.mxu0 0
        %626 = vmatmul.mubr.bf16.gmra.mxu0 %v591
        %v627 = vpop.f32.mrf.mxu0
        %v628 = vadd.f32 %v552, %v627
        %v629 = vpop.f32.mrf.mxu0
        %v630 = vadd.f32 %v556, %v629
        %v631 = vpop.f32.mrf.mxu0
        %v632 = vpop.f32.mrf.mxu0
        %633 = vdwg.mxu0
        %634 = vmatprep.subr.bf16.mxu0 0
        %635 = vmatpush1.bf16.msra.mxu0 0
        %636 = vmatprep.subr.bf16.mxu0 0
        %637 = vmatpush1.bf16.msra.mxu0 0
        %638 = vmatprep.subr.bf16.mxu0 0
        %639 = vmatpush1.bf16.msra.mxu0 0
        %640 = vmatprep.subr.bf16.mxu0 0
        %641 = vmatpush1.bf16.msra.mxu0 0
        %642 = vmatprep.subr.bf16.mxu0 0
        %643 = vmatpush1.bf16.msra.mxu0 0
        %644 = vmatprep.subr.bf16.mxu0 0
        %645 = vmatpush1.bf16.msra.mxu0 0
        %646 = vmatprep.subr.bf16.mxu0 %v527
        %647 = vmatpush1.bf16.msra.mxu0 %v526
        %648 = vmatprep.subr.bf16.mxu0 %v519
        %649 = vmatpush1.bf16.msra.mxu0 %v518
        %650 = vmatprep.subr.bf16.mxu0 0
        %651 = vmatpush2.bf16.msra.mxu0 0
        %652 = vmatprep.subr.bf16.mxu0 0
        %653 = vmatpush2.bf16.msra.mxu0 0
        %654 = vmatprep.subr.bf16.mxu0 0
        %655 = vmatpush2.bf16.msra.mxu0 0
        %656 = vmatprep.subr.bf16.mxu0 0
        %657 = vmatpush2.bf16.msra.mxu0 0
        %658 = vmatprep.subr.bf16.mxu0 0
        %659 = vmatpush2.bf16.msra.mxu0 0
        %660 = vmatprep.subr.bf16.mxu0 0
        %661 = vmatpush2.bf16.msra.mxu0 0
        %662 = vmatprep.subr.bf16.mxu0 0
        %663 = vmatpush2.bf16.msra.mxu0 0
        %664 = vmatprep.subr.bf16.mxu0 0
        %665 = vmatpush2.bf16.msra.mxu0 0
        %666 = vmatprep.mubr.bf16.mxu0 0
        %667 = vmatmul.mubr.bf16.gmra.mxu0 %v591
        %v668 = vpop.f32.mrf.mxu0
        %v669 = vadd.f32 %v560, %v668
        %v670 = vpop.f32.mrf.mxu0
        %v671 = vadd.f32 %v564, %v670
        %v672 = vpop.f32.mrf.mxu0
        %v673 = vpop.f32.mrf.mxu0
        %674 = vdwg.mxu0
        %675 = vmatprep.subr.bf16.mxu0 0
        %676 = vmatpush1.bf16.msra.mxu0 0
        %677 = vmatprep.subr.bf16.mxu0 0
        %678 = vmatpush1.bf16.msra.mxu0 0
        %679 = vmatprep.subr.bf16.mxu0 0
        %680 = vmatpush1.bf16.msra.mxu0 0
        %681 = vmatprep.subr.bf16.mxu0 0
        %682 = vmatpush1.bf16.msra.mxu0 0
        %683 = vmatprep.subr.bf16.mxu0 0
        %684 = vmatpush1.bf16.msra.mxu0 0
        %685 = vmatprep.subr.bf16.mxu0 0
        %686 = vmatpush1.bf16.msra.mxu0 0
        %687 = vmatprep.subr.bf16.mxu0 %v529
        %688 = vmatpush1.bf16.msra.mxu0 %v528
        %689 = vmatprep.subr.bf16.mxu0 %v521
        %690 = vmatpush1.bf16.msra.mxu0 %v520
        %691 = vmatprep.subr.bf16.mxu0 0
        %692 = vmatpush2.bf16.msra.mxu0 0
        %693 = vmatprep.subr.bf16.mxu0 0
        %694 = vmatpush2.bf16.msra.mxu0 0
        %695 = vmatprep.subr.bf16.mxu0 0
        %696 = vmatpush2.bf16.msra.mxu0 0
        %697 = vmatprep.subr.bf16.mxu0 0
        %698 = vmatpush2.bf16.msra.mxu0 0
        %699 = vmatprep.subr.bf16.mxu0 0
        %700 = vmatpush2.bf16.msra.mxu0 0
        %701 = vmatprep.subr.bf16.mxu0 0
        %702 = vmatpush2.bf16.msra.mxu0 0
        %703 = vmatprep.subr.bf16.mxu0 0
        %704 = vmatpush2.bf16.msra.mxu0 0
        %705 = vmatprep.subr.bf16.mxu0 0
        %706 = vmatpush2.bf16.msra.mxu0 0
        %707 = vmatprep.mubr.bf16.mxu0 0
        %708 = vmatmul.mubr.bf16.gmra.mxu0 %v591
        %v709 = vpop.f32.mrf.mxu0
        %v710 = vadd.f32 %v568, %v709
        %v711 = vpop.f32.mrf.mxu0
        %v712 = vadd.f32 %v572, %v711
        %v713 = vpop.f32.mrf.mxu0
        %v714 = vpop.f32.mrf.mxu0
        %715 = vdwg.mxu0
        %716 = vmatprep.subr.bf16.mxu0 0
        %717 = vmatpush1.bf16.msra.mxu0 0
        %718 = vmatprep.subr.bf16.mxu0 0
        %719 = vmatpush1.bf16.msra.mxu0 0
        %720 = vmatprep.subr.bf16.mxu0 0
        %721 = vmatpush1.bf16.msra.mxu0 0
        %722 = vmatprep.subr.bf16.mxu0 0
        %723 = vmatpush1.bf16.msra.mxu0 0
        %724 = vmatprep.subr.bf16.mxu0 0
        %725 = vmatpush1.bf16.msra.mxu0 0
        %726 = vmatprep.subr.bf16.mxu0 0
        %727 = vmatpush1.bf16.msra.mxu0 0
        %728 = vmatprep.subr.bf16.mxu0 %v531
        %729 = vmatpush1.bf16.msra.mxu0 %v530
        %730 = vmatprep.subr.bf16.mxu0 %v523
        %731 = vmatpush1.bf16.msra.mxu0 %v522
        %732 = vmatprep.subr.bf16.mxu0 0
        %733 = vmatpush2.bf16.msra.mxu0 0
        %734 = vmatprep.subr.bf16.mxu0 0
        %735 = vmatpush2.bf16.msra.mxu0 0
        %736 = vmatprep.subr.bf16.mxu0 0
        %737 = vmatpush2.bf16.msra.mxu0 0
        %738 = vmatprep.subr.bf16.mxu0 0
        %739 = vmatpush2.bf16.msra.mxu0 0
        %740 = vmatprep.subr.bf16.mxu0 0
        %741 = vmatpush2.bf16.msra.mxu0 0
        %742 = vmatprep.subr.bf16.mxu0 0
        %743 = vmatpush2.bf16.msra.mxu0 0
        %744 = vmatprep.subr.bf16.mxu0 0
        %745 = vmatpush2.bf16.msra.mxu0 0
        %746 = vmatprep.subr.bf16.mxu0 0
        %747 = vmatpush2.bf16.msra.mxu0 0
        %748 = vmatprep.mubr.bf16.mxu0 0
        %749 = vmatmul.mubr.bf16.gmra.mxu0 %v591
        %v750 = vpop.f32.mrf.mxu0
        %v751 = vadd.f32 %v576, %v750
        %v752 = vpop.f32.mrf.mxu0
        %v753 = vadd.f32 %v580, %v752
        %v754 = vpop.f32.mrf.mxu0
        %v755 = vpop.f32.mrf.mxu0
        %756 = vdwg.mxu0
        %v757 = vmax.f32 %v628, 0.0
        %v758 = vmax.f32 %v630, 0.0
        %v759 = vmax.f32 %v669, 0.0
        %v760 = vmax.f32 %v671, 0.0
        %v761 = vmax.f32 %v710, 0.0
        %v762 = vmax.f32 %v712, 0.0
        %v763 = vmax.f32 %v751, 0.0
        %v764 = vmax.f32 %v753, 0.0
        %v766 = vrot.slane %v758, 7
        %v769 = vrot.slane %v759, 6
        %v772 = vrot.slane %v760, 5
        %v775 = vrot.slane %v761, 4
        %v778 = vrot.slane %v762, 3
        %v781 = vrot.slane %v763, 2
        %v784 = vrot.slane %v764, 1
        %vm786 = vcmask 1040384
        %v787 = vsel %vm786, %v757, %v766
        %vm788 = vcmask 1041408
        %v789 = vsel %vm788, %v787, %v769
        %vm790 = vcmask 1042432
        %v791 = vsel %vm790, %v789, %v772
        %vm792 = vcmask 1043456
        %v793 = vsel %vm792, %v791, %v775
        %vm794 = vcmask 1044480
        %v795 = vsel %vm794, %v793, %v778
        %vm796 = vcmask 1045504
        %v797 = vsel %vm796, %v795, %v781
        %vm798 = vcmask 1046528
        %v799 = vsel %vm798, %v797, %v784
        %v800 = vlaneseq
        %v801 = vand.u32 %v800, 127
        %802 = vrot.lane.b32.xlu0 %v799, 1
        %v803 = vpop.permute.xlu0 %802
        %vm804 = vcmp.lt.s32.totalorder %v801, 0
        %v805 = vsub.s32 0, %v801
        %v806 = vsel %vm804, %v805, %v801
        %v807 = vshrl.u32 %v806, 7
        %v808 = vand.u32 %v806, 127
        %v809 = vsub.s32 0, %v808
        %v810 = vsel %vm804, %v809, %v808
        %vm811 = vcmp.ne.s32.totalorder %v810, 0
        %vm812 = vcmp.lt.s32.totalorder %v810, 0
        %vm813 = vmand %vm812, %vm811
        %v814 = vadd.s32 %v810, 128
        %v815 = vsel %vm813, %v814, %v810
        %vm816 = vcmp.eq.s32.totalorder %v815, 0
        %v817 = vsel %vm816, 0.0, %v803
        %818 = vrot.lane.b32.xlu0 %v799, 127
        %v819 = vpop.permute.xlu0 %818
        %vm820 = vcmp.eq.s32.totalorder %v815, 127
        %v821 = vsel %vm820, 0.0, %v819
        %v822 = vpack.c.bf16 %v799, %v817
        %v823 = vpack.c.bf16 %v821, %v821
        %v824 = vld [vmem:[%s3] sm:$0xf]
        %v825 = vld [vmem:[%s4] sm:$0xff]
        %827 = vset.pattern.permute.xlu0 0
        %828 = vperm.xlu0 %827, %v825
        %v829 = vpop.permute.xlu0 %828
        %vm831 = vcmask 195584
        %v833 = vsel %vm831, %v824, 0
        %v836 = vsel %vm792, %v823, 0
        %838 = vmatprep.subr.bf16.mxu0 0
        %839 = vmatpush1.bf16.msra.mxu0 0
        %840 = vmatprep.subr.bf16.mxu0 0
        %841 = vmatpush1.bf16.msra.mxu0 0
        %842 = vmatprep.subr.bf16.mxu0 0
        %843 = vmatpush1.bf16.msra.mxu0 0
        %844 = vmatprep.subr.bf16.mxu0 0
        %845 = vmatpush1.bf16.msra.mxu0 0
        %846 = vmatprep.subr.bf16.mxu0 0
        %847 = vmatpush1.bf16.msra.mxu0 0
        %848 = vmatprep.subr.bf16.mxu0 0
        %849 = vmatpush1.bf16.msra.mxu0 0
        %850 = vmatprep.subr.bf16.mxu0 0
        %851 = vmatpush1.bf16.msra.mxu0 %v836
        %852 = vmatprep.subr.bf16.mxu0 0
        %853 = vmatpush1.bf16.msra.mxu0 %v822
        %854 = vmatprep.subr.bf16.mxu0 0
        %855 = vmatpush2.bf16.msra.mxu0 0
        %856 = vmatprep.subr.bf16.mxu0 0
        %857 = vmatpush2.bf16.msra.mxu0 0
        %858 = vmatprep.subr.bf16.mxu0 0
        %859 = vmatpush2.bf16.msra.mxu0 0
        %860 = vmatprep.subr.bf16.mxu0 0
        %861 = vmatpush2.bf16.msra.mxu0 0
        %862 = vmatprep.subr.bf16.mxu0 0
        %863 = vmatpush2.bf16.msra.mxu0 0
        %864 = vmatprep.subr.bf16.mxu0 0
        %865 = vmatpush2.bf16.msra.mxu0 0
        %866 = vmatprep.subr.bf16.mxu0 0
        %867 = vmatpush2.bf16.msra.mxu0 0
        %868 = vmatprep.subr.bf16.mxu0 0
        %869 = vmatpush2.bf16.msra.mxu0 0
        %870 = vmatprep.mubr.bf16.mxu0 0
        %871 = vmatmul.mubr.bf16.gmra.mxu0 %v833
        %v872 = vpop.f32.mrf.mxu0
        %v873 = vadd.f32 %v829, %v872
        %v874 = vpop.f32.mrf.mxu0
        %v875 = vpop.f32.mrf.mxu0
        %v876 = vpop.f32.mrf.mxu0
        %877 = vdwg.mxu0
        %v878 = vmax.f32 %v873, 0.0
        %879 = vrot.lane.b32.xlu0 %v878, 127
        %v880 = vpop.permute.xlu0 %879
        %v881 = vsel %vm820, 0.0, %v880
        %v882 = vpack.c.bf16 %v881, %v878
        %v883 = vld [vmem:[%s5] sm:$0xf]
        %v884 = vld [vmem:[%s5 + $0x4] sm:$0xf]
        %v885 = vld [vmem:[%s6] sm:$0xff]
        %v886 = vld [vmem:[%s6 + $0x8] sm:$0xff]
        %888 = vset.pattern.permute.xlu0 0
        %889 = vperm.xlu0 %888, %v885
        %v890 = vpop.permute.xlu0 %889
        %893 = vset.pattern.permute.xlu0 0
        %894 = vperm.xlu0 %893, %v886
        %v895 = vpop.permute.xlu0 %894
        %v899 = vunpack.c.l.b16 %v883
        %v900 = vunpack.c.l.b16 %v884
        %v901 = vpack.c.b16 %v900, %v899
        %vm902 = vcmask 130048
        %v904 = vsel %vm902, %v901, 0
        %906 = vmatprep.subr.bf16.mxu0 0
        %907 = vmatpush1.bf16.msra.mxu0 0
        %908 = vmatprep.subr.bf16.mxu0 0
        %909 = vmatpush1.bf16.msra.mxu0 0
        %910 = vmatprep.subr.bf16.mxu0 0
        %911 = vmatpush1.bf16.msra.mxu0 0
        %912 = vmatprep.subr.bf16.mxu0 0
        %913 = vmatpush1.bf16.msra.mxu0 0
        %914 = vmatprep.subr.bf16.mxu0 0
        %915 = vmatpush1.bf16.msra.mxu0 0
        %916 = vmatprep.subr.bf16.mxu0 0
        %917 = vmatpush1.bf16.msra.mxu0 0
        %918 = vmatprep.subr.bf16.mxu0 0
        %919 = vmatpush1.bf16.msra.mxu0 0
        %920 = vmatprep.subr.bf16.mxu0 0
        %921 = vmatpush1.bf16.msra.mxu0 %v882
        %922 = vmatprep.subr.bf16.mxu0 0
        %923 = vmatpush2.bf16.msra.mxu0 0
        %924 = vmatprep.subr.bf16.mxu0 0
        %925 = vmatpush2.bf16.msra.mxu0 0
        %926 = vmatprep.subr.bf16.mxu0 0
        %927 = vmatpush2.bf16.msra.mxu0 0
        %928 = vmatprep.subr.bf16.mxu0 0
        %929 = vmatpush2.bf16.msra.mxu0 0
        %930 = vmatprep.subr.bf16.mxu0 0
        %931 = vmatpush2.bf16.msra.mxu0 0
        %932 = vmatprep.subr.bf16.mxu0 0
        %933 = vmatpush2.bf16.msra.mxu0 0
        %934 = vmatprep.subr.bf16.mxu0 0
        %935 = vmatpush2.bf16.msra.mxu0 0
        %936 = vmatprep.subr.bf16.mxu0 0
        %937 = vmatpush2.bf16.msra.mxu0 0
        %938 = vmatprep.mubr.bf16.mxu0 0
        %939 = vmatmul.mubr.bf16.gmra.mxu0 %v904
        %v940 = vpop.f32.mrf.mxu0
        %v941 = vadd.f32 %v890, %v940
        %v942 = vpop.f32.mrf.mxu0
        %v943 = vpop.f32.mrf.mxu0
        %v944 = vadd.f32 %v895, %v943
        %v945 = vpop.f32.mrf.mxu0
        %946 = vdwg.mxu0
        %v947 = vadd.s32 %v801, 128
        %948 = vrot.lane.b32.xlu0 %v941, 1
        %v949 = vpop.permute.xlu0 %948
        %950 = vrot.lane.b32.xlu0 %v944, 1
        %v951 = vpop.permute.xlu0 %950
        %vm952 = vcmp.lt.s32.totalorder %v801, 1
        %v953 = vsel %vm952, %v949, %v951
        %v954 = vsel %vm952, %v951, %v949
        %vm955 = vcmp.lt.s32.totalorder %v947, 0
        %v956 = vsub.s32 0, %v947
        %v957 = vsel %vm955, %v956, %v947
        %v958 = vshrl.u32 %v957, 7
        %v959 = vand.u32 %v957, 127
        %v960 = vsub.s32 0, %v959
        %v961 = vsel %vm955, %v960, %v959
        %vm962 = vcmp.ne.s32.totalorder %v961, 0
        %vm963 = vcmp.lt.s32.totalorder %v961, 0
        %vm964 = vmand %vm963, %vm962
        %v965 = vadd.s32 %v961, 128
        %v966 = vsel %vm964, %v965, %v961
        %vm967 = vcmp.eq.s32.totalorder %v966, 0
        %v968 = vsel %vm816, 0.0, %v953
        %v969 = vsel %vm967, 0.0, %v954
        %vm970 = vcmp.ge.s32.totalorder %v801, 128
        %vm971 = vcmp.ge.s32.totalorder %v947, 128
        %v972 = vsel %vm970, %v944, %v968
        %v973 = vsel %vm971, %v941, %v969
        %974 = vrot.lane.b32.xlu0 %v941, 127
        %v975 = vpop.permute.xlu0 %974
        %976 = vrot.lane.b32.xlu0 %v944, 127
        %v977 = vpop.permute.xlu0 %976
        %vm978 = vcmp.lt.s32.totalorder %v801, 127
        %v979 = vsel %vm978, %v975, %v977
        %v980 = vsel %vm978, %v977, %v975
        %vm981 = vcmp.eq.s32.totalorder %v966, 127
        %v982 = vsel %vm820, 0.0, %v980
        %v983 = vsel %vm981, 0.0, %v979
        %vm984 = vcmp.lt.s32.totalorder %v801, 128
        %vm985 = vcmp.lt.s32.totalorder %v947, 128
        %v986 = vsel %vm984, %v944, %v982
        %v987 = vsel %vm985, %v941, %v983
        %v988 = vpack.c.bf16 %v941, %v972
        %v989 = vpack.c.bf16 %v944, %v973
        %v990 = vpack.c.bf16 %v986, %v986
        %v991 = vpack.c.bf16 %v987, %v987
        %v992 = vld [vmem:[%s7] sm:$0xf]
        %v993 = vld [vmem:[%s8] sm:$0xff]
        %995 = vset.pattern.permute.xlu0 0
        %996 = vperm.xlu0 %995, %v993
        %v997 = vpop.permute.xlu0 %996
        %v1000 = vsel %vm831, %v992, 0
        %v1003 = vsel %vm792, %v990, 0
        %v1006 = vsel %vm792, %v991, 0
        %1008 = vmatprep.subr.bf16.mxu0 0
        %1009 = vmatpush1.bf16.msra.mxu0 0
        %1010 = vmatprep.subr.bf16.mxu0 0
        %1011 = vmatpush1.bf16.msra.mxu0 0
        %1012 = vmatprep.subr.bf16.mxu0 0
        %1013 = vmatpush1.bf16.msra.mxu0 0
        %1014 = vmatprep.subr.bf16.mxu0 0
        %1015 = vmatpush1.bf16.msra.mxu0 0
        %1016 = vmatprep.subr.bf16.mxu0 0
        %1017 = vmatpush1.bf16.msra.mxu0 0
        %1018 = vmatprep.subr.bf16.mxu0 0
        %1019 = vmatpush1.bf16.msra.mxu0 0
        %1020 = vmatprep.subr.bf16.mxu0 %v1006
        %1021 = vmatpush1.bf16.msra.mxu0 %v1003
        %1022 = vmatprep.subr.bf16.mxu0 %v989
        %1023 = vmatpush1.bf16.msra.mxu0 %v988
        %1024 = vmatprep.subr.bf16.mxu0 0
        %1025 = vmatpush2.bf16.msra.mxu0 0
        %1026 = vmatprep.subr.bf16.mxu0 0
        %1027 = vmatpush2.bf16.msra.mxu0 0
        %1028 = vmatprep.subr.bf16.mxu0 0
        %1029 = vmatpush2.bf16.msra.mxu0 0
        %1030 = vmatprep.subr.bf16.mxu0 0
        %1031 = vmatpush2.bf16.msra.mxu0 0
        %1032 = vmatprep.subr.bf16.mxu0 0
        %1033 = vmatpush2.bf16.msra.mxu0 0
        %1034 = vmatprep.subr.bf16.mxu0 0
        %1035 = vmatpush2.bf16.msra.mxu0 0
        %1036 = vmatprep.subr.bf16.mxu0 0
        %1037 = vmatpush2.bf16.msra.mxu0 0
        %1038 = vmatprep.subr.bf16.mxu0 0
        %1039 = vmatpush2.bf16.msra.mxu0 0
        %1040 = vmatprep.mubr.bf16.mxu0 0
        %1041 = vmatmul.mubr.bf16.gmra.mxu0 %v1000
        %v1042 = vpop.f32.mrf.mxu0
        %v1043 = vadd.f32 %v997, %v1042
        %v1044 = vpop.f32.mrf.mxu0
        %v1045 = vadd.f32 %v997, %v1044
        %v1046 = vpop.f32.mrf.mxu0
        %v1047 = vpop.f32.mrf.mxu0
        %1048 = vdwg.mxu0
        %v1049 = vmax.f32 %v1043, 0.0
        %v1050 = vmax.f32 %v1045, 0.0
        %1051 = vrot.lane.b32.xlu0 %v1049, 127
        %v1052 = vpop.permute.xlu0 %1051
        %1053 = vrot.lane.b32.xlu0 %v1050, 127
        %v1054 = vpop.permute.xlu0 %1053
        %v1055 = vsel %vm978, %v1052, %v1054
        %v1056 = vsel %vm978, %v1054, %v1052
        %v1057 = vsel %vm820, 0.0, %v1056
        %v1058 = vsel %vm981, 0.0, %v1055
        %v1059 = vsel %vm984, %v1050, %v1057
        %v1060 = vsel %vm985, %v1049, %v1058
        %v1061 = vpack.c.bf16 %v1059, %v1049
        %v1062 = vpack.c.bf16 %v1060, %v1050
        %v1063 = vld [vmem:[%s9] sm:$0xf]
        %v1064 = vld [vmem:[%s9 + $0x4] sm:$0xf]
        %v1065 = vld [vmem:[%s10] sm:$0xff]
        %v1066 = vld [vmem:[%s10 + $0x8] sm:$0xff]
        %1068 = vset.pattern.permute.xlu0 0
        %1069 = vperm.xlu0 %1068, %v1065
        %v1070 = vpop.permute.xlu0 %1069
        %1073 = vset.pattern.permute.xlu0 0
        %1074 = vperm.xlu0 %1073, %v1066
        %v1075 = vpop.permute.xlu0 %1074
        %v1079 = vunpack.c.l.b16 %v1063
        %v1080 = vunpack.c.l.b16 %v1064
        %v1081 = vpack.c.b16 %v1080, %v1079
        %v1083 = vsel %vm902, %v1081, 0
        %1085 = vmatprep.subr.bf16.mxu0 0
        %1086 = vmatpush1.bf16.msra.mxu0 0
        %1087 = vmatprep.subr.bf16.mxu0 0
        %1088 = vmatpush1.bf16.msra.mxu0 0
        %1089 = vmatprep.subr.bf16.mxu0 0
        %1090 = vmatpush1.bf16.msra.mxu0 0
        %1091 = vmatprep.subr.bf16.mxu0 0
        %1092 = vmatpush1.bf16.msra.mxu0 0
        %1093 = vmatprep.subr.bf16.mxu0 0
        %1094 = vmatpush1.bf16.msra.mxu0 0
        %1095 = vmatprep.subr.bf16.mxu0 0
        %1096 = vmatpush1.bf16.msra.mxu0 0
        %1097 = vmatprep.subr.bf16.mxu0 0
        %1098 = vmatpush1.bf16.msra.mxu0 0
        %1099 = vmatprep.subr.bf16.mxu0 %v1062
        %1100 = vmatpush1.bf16.msra.mxu0 %v1061
        %1101 = vmatprep.subr.bf16.mxu0 0
        %1102 = vmatpush2.bf16.msra.mxu0 0
        %1103 = vmatprep.subr.bf16.mxu0 0
        %1104 = vmatpush2.bf16.msra.mxu0 0
        %1105 = vmatprep.subr.bf16.mxu0 0
        %1106 = vmatpush2.bf16.msra.mxu0 0
        %1107 = vmatprep.subr.bf16.mxu0 0
        %1108 = vmatpush2.bf16.msra.mxu0 0
        %1109 = vmatprep.subr.bf16.mxu0 0
        %1110 = vmatpush2.bf16.msra.mxu0 0
        %1111 = vmatprep.subr.bf16.mxu0 0
        %1112 = vmatpush2.bf16.msra.mxu0 0
        %1113 = vmatprep.subr.bf16.mxu0 0
        %1114 = vmatpush2.bf16.msra.mxu0 0
        %1115 = vmatprep.subr.bf16.mxu0 0
        %1116 = vmatpush2.bf16.msra.mxu0 0
        %1117 = vmatprep.mubr.bf16.mxu0 0
        %1118 = vmatmul.mubr.bf16.gmra.mxu0 %v1083
        %v1119 = vpop.f32.mrf.mxu0
        %v1120 = vadd.f32 %v1070, %v1119
        %v1121 = vpop.f32.mrf.mxu0
        %v1122 = vadd.f32 %v1070, %v1121
        %v1123 = vpop.f32.mrf.mxu0
        %v1124 = vadd.f32 %v1075, %v1123
        %v1125 = vpop.f32.mrf.mxu0
        %v1126 = vadd.f32 %v1075, %v1125
        %1127 = vdwg.mxu0
        %v1128 = vld [vmem:[%s11] sm:$0x3]
        %v1129 = vpack.c.bf16 %v1120, %v1120
        %v1130 = vpack.c.bf16 %v1124, %v1124
        %v1131 = vpack.c.bf16 %v1122, %v1122
        %v1132 = vpack.c.bf16 %v1126, %v1126
        %v1133 = vld [vmem:[%s12] sm:$0xf]
        %1135 = vset.pattern.permute.xlu0 0
        %1136 = vperm.xlu0 %1135, %v1133
        %v1137 = vpop.permute.xlu0 %1136
        %vm1139 = vcmask 64512
        %v1141 = vsel %vm1139, %v1128, 0
        %v1144 = vsel %vm792, %v1129, 0
        %v1147 = vsel %vm792, %v1130, 0
        %v1150 = vsel %vm792, %v1131, 0
        %v1153 = vsel %vm792, %v1132, 0
        %1155 = vmatprep.subr.bf16.mxu0 0
        %1156 = vmatpush1.bf16.msra.mxu0 0
        %1157 = vmatprep.subr.bf16.mxu0 0
        %1158 = vmatpush1.bf16.msra.mxu0 0
        %1159 = vmatprep.subr.bf16.mxu0 0
        %1160 = vmatpush1.bf16.msra.mxu0 0
        %1161 = vmatprep.subr.bf16.mxu0 0
        %1162 = vmatpush1.bf16.msra.mxu0 0
        %1163 = vmatprep.subr.bf16.mxu0 0
        %1164 = vmatpush1.bf16.msra.mxu0 0
        %1165 = vmatprep.subr.bf16.mxu0 0
        %1166 = vmatpush1.bf16.msra.mxu0 0
        %1167 = vmatprep.subr.bf16.mxu0 0
        %1168 = vmatpush1.bf16.msra.mxu0 0
        %1169 = vmatprep.subr.bf16.mxu0 %v1147
        %1170 = vmatpush1.bf16.msra.mxu0 %v1144
        %1171 = vmatprep.subr.bf16.mxu0 0
        %1172 = vmatpush2.bf16.msra.mxu0 0
        %1173 = vmatprep.subr.bf16.mxu0 0
        %1174 = vmatpush2.bf16.msra.mxu0 0
        %1175 = vmatprep.subr.bf16.mxu0 0
        %1176 = vmatpush2.bf16.msra.mxu0 0
        %1177 = vmatprep.subr.bf16.mxu0 0
        %1178 = vmatpush2.bf16.msra.mxu0 0
        %1179 = vmatprep.subr.bf16.mxu0 0
        %1180 = vmatpush2.bf16.msra.mxu0 0
        %1181 = vmatprep.subr.bf16.mxu0 0
        %1182 = vmatpush2.bf16.msra.mxu0 0
        %1183 = vmatprep.subr.bf16.mxu0 0
        %1184 = vmatpush2.bf16.msra.mxu0 0
        %1185 = vmatprep.subr.bf16.mxu0 0
        %1186 = vmatpush2.bf16.msra.mxu0 0
        %1187 = vmatprep.mubr.bf16.mxu0 0
        %1188 = vmatmul.mubr.bf16.gmra.mxu0 %v1141
        %v1189 = vpop.f32.mrf.mxu0
        %v1190 = vadd.f32 %v1137, %v1189
        %v1191 = vpop.f32.mrf.mxu0
        %v1192 = vadd.f32 %v1137, %v1191
        %v1193 = vpop.f32.mrf.mxu0
        %v1194 = vpop.f32.mrf.mxu0
        %1195 = vdwg.mxu0
        %1196 = vmatprep.subr.bf16.mxu0 0
        %1197 = vmatpush1.bf16.msra.mxu0 0
        %1198 = vmatprep.subr.bf16.mxu0 0
        %1199 = vmatpush1.bf16.msra.mxu0 0
        %1200 = vmatprep.subr.bf16.mxu0 0
        %1201 = vmatpush1.bf16.msra.mxu0 0
        %1202 = vmatprep.subr.bf16.mxu0 0
        %1203 = vmatpush1.bf16.msra.mxu0 0
        %1204 = vmatprep.subr.bf16.mxu0 0
        %1205 = vmatpush1.bf16.msra.mxu0 0
        %1206 = vmatprep.subr.bf16.mxu0 0
        %1207 = vmatpush1.bf16.msra.mxu0 0
        %1208 = vmatprep.subr.bf16.mxu0 0
        %1209 = vmatpush1.bf16.msra.mxu0 0
        %1210 = vmatprep.subr.bf16.mxu0 %v1153
        %1211 = vmatpush1.bf16.msra.mxu0 %v1150
        %1212 = vmatprep.subr.bf16.mxu0 0
        %1213 = vmatpush2.bf16.msra.mxu0 0
        %1214 = vmatprep.subr.bf16.mxu0 0
        %1215 = vmatpush2.bf16.msra.mxu0 0
        %1216 = vmatprep.subr.bf16.mxu0 0
        %1217 = vmatpush2.bf16.msra.mxu0 0
        %1218 = vmatprep.subr.bf16.mxu0 0
        %1219 = vmatpush2.bf16.msra.mxu0 0
        %1220 = vmatprep.subr.bf16.mxu0 0
        %1221 = vmatpush2.bf16.msra.mxu0 0
        %1222 = vmatprep.subr.bf16.mxu0 0
        %1223 = vmatpush2.bf16.msra.mxu0 0
        %1224 = vmatprep.subr.bf16.mxu0 0
        %1225 = vmatpush2.bf16.msra.mxu0 0
        %1226 = vmatprep.subr.bf16.mxu0 0
        %1227 = vmatpush2.bf16.msra.mxu0 0
        %1228 = vmatprep.mubr.bf16.mxu0 0
        %1229 = vmatmul.mubr.bf16.gmra.mxu0 %v1141
        %v1230 = vpop.f32.mrf.mxu0
        %v1231 = vadd.f32 %v1137, %v1230
        %v1232 = vpop.f32.mrf.mxu0
        %v1233 = vadd.f32 %v1137, %v1232
        %v1234 = vpop.f32.mrf.mxu0
        %v1235 = vpop.f32.mrf.mxu0
        %1236 = vdwg.mxu0
        %v1237 = vsub.f32 0.0, %v1190
        %v1238 = vsub.f32 0.0, %v1192
        %v1239 = vsub.f32 0.0, %v1231
        %v1240 = vsub.f32 0.0, %v1233
        %v1241 = vmul.f32 %v1237, 1.442695
        %v1242 = vpow.pop %v1241
        %v1243 = vmul.f32 %v1238, 1.442695
        %v1244 = vpow.pop %v1243
        %v1245 = vmul.f32 %v1239, 1.442695
        %v1246 = vpow.pop %v1245
        %v1247 = vmul.f32 %v1240, 1.442695
        %v1248 = vpow.pop %v1247
        %v1249 = vadd.f32 %v1242, 1.0
        %v1250 = vadd.f32 %v1244, 1.0
        %v1251 = vadd.f32 %v1246, 1.0
        %v1252 = vadd.f32 %v1248, 1.0
        %v1253 = vrcp.pop %v1249
        %v1254 = vrcp.pop %v1250
        %v1255 = vrcp.pop %v1251
        %v1256 = vrcp.pop %v1252
        %1257 = vst [vmem:[%s444] sm:$0xf] %v1253
        %1258 = vst [vmem:[%s444 + $0x4] sm:$0xf] %v1254
        %1259 = vst [vmem:[%s444 + $0x8] sm:$0xf] %v1255
        %1260 = vst [vmem:[%s444 + $0xc] sm:$0xf] %v1256
        %s1261 = sand.u32 %s314, 1
        %s1262 = scalar_lea.sflag [#allocation4], %s1261
        %s1263 = sand.u32 %s314, 1
        %s1264 = smul.addr %s1263, 16
        %s1265 = scalar_lea.vmem [#allocation5], %s1264
        // Predicated region
        $region77: #{tpu_custom_call.1} parent=71 // pred_check
          %p1266 = pneg %p324
        $region78: #{tpu_custom_call.1} parent=71 // pred_check_branch
          %1268 = sbr.rel (%p1266) target = $region80
        $region79: #{tpu_custom_call.1} parent=71 // pred_region
          %s1270 = ssub.s32 256, 256
          %1271 = vsyncadd %s1262, %s1270
          %s1272 = smul.addr %s28, 4
          %s1273 = smul.addr %s1272, 64
          %s1274 = scalar_lea.hbm %s13, %s1273
          %s1276 = sshll.u32 %s1265, 4
          %s1277 = int_to_ptr.vmem [resolvable:$true] %s1276
          %1279 = dma.vmem_to_hbm [thread:$0]  %s1277, 256, %s1274, %s1262
        $region80: #{tpu_custom_call.1} parent=71 // pred_fallthru
          _
      $region72: #{tpu_custom_call.1} parent=5 // pred_fallthru
        _
      %p1280 = scmp.le.s32.totalorder 2, %s23
      // Predicated region
      $region81: #{tpu_custom_call.1} parent=5 // pred_check
        %p1281 = pneg %p1280
      $region82: #{tpu_custom_call.1} parent=5 // pred_check_branch
        %1283 = sbr.rel (%p1281) target = $region84
      $region83: #{tpu_custom_call.1} parent=5 // pred_region
        %s1284 = ssub.s32 %s23, 2
        // Predicated region
        $region85: #{tpu_custom_call.1} parent=83 // pred_check
          %p1285 = pneg %p330
        $region86: #{tpu_custom_call.1} parent=83 // pred_check_branch
          %1287 = sbr.rel (%p1285) target = $region88
        $region87: #{tpu_custom_call.1} parent=83 // pred_region
          %s1288 = sand.u32 %s315, 1
          %s1289 = scalar_lea.sflag [#allocation4], %s1288
          %s1290 = sand.u32 %s315, 1
          %s1291 = smul.addr %s1290, 16
          %s1292 = scalar_lea.vmem [#allocation5], %s1291
          %1293 = dma.done %s1289, 256
        $region88: #{tpu_custom_call.1} parent=83 // pred_fallthru
          _
      $region84: #{tpu_custom_call.1} parent=5 // pred_fallthru
        _
    $region6: #{tpu_custom_call.1} parent=1 // loop_footer
      %s27 = sadd.s32 1, %s23
    $region7: #{tpu_custom_call.1} parent=1 // loop_footer_branch
      %22 = sbr.rel target = $region3
    $region8: #{tpu_custom_call.1} parent=1 // loop_exit
      _
    %1294 = vsyncpa [#allocation3], 1
    %s1295 = scalar_lea.sflag [#allocation3], 1
    %1296 = vsyncpa %s1295, 1
    %1297 = vsyncpa [#allocation4], 1
    %s1298 = scalar_lea.sflag [#allocation4], 1
    %1299 = vsyncpa %s1298, 1

</llo_original>
